<compile_context>
chip_gen: v7x
topology: tpu7x:2x2x1
jax: 0.10.0
libtpu: 0.0.40
codegen_flags: <defaults>
</compile_context>

<pallas_src>
import jax
import jax.numpy as jnp
from jax.experimental import pallas as pl
from jax.experimental.pallas import tpu as pltpu


def se_gate_conv1x1_kernel(gate_ref, w_ref, x_ref, o_ref):
    # gate_ref: (1, C_in)      per-channel gate logits (pre-sigmoid)
    # w_ref:    (C_out, C_in)  1x1 conv weight
    # x_ref:    (C_in, TM)     spatial tile, channels on the sublane axis
    # o_ref:    (C_out, TM)
    gate = jax.nn.sigmoid(gate_ref[...].astype(jnp.float32))          # (1, C_in)
    # Fold the sigmoid gate into the small weight instead of scaling the big
    # activation tile (C_out*C_in mults vs C_in*TM mults).
    w_gated = w_ref[...].astype(jnp.float32) * gate                   # (C_out, C_in)
    o_ref[...] = jnp.dot(
        w_gated, x_ref[...].astype(jnp.float32),
        preferred_element_type=jnp.float32,
    ).astype(o_ref.dtype)


def se_gate_conv1x1(x_nchw, gate_nc11, w_oi11, *, vmem_budget_bytes=16 * 1024 * 1024):
    """sigmoid(gate) * x, then 1x1 conv (no bias). Inputs/outputs are NCHW."""
    n, c_in, h, w = x_nchw.shape
    c_out = w_oi11.shape[0]
    m = h * w
    itemsize = jnp.dtype(x_nchw.dtype).itemsize

    # Free (contiguous) reshapes only — no NCHW<->NHWC transposes.
    x3 = x_nchw.reshape(n, c_in, m)          # (N, C_in, M)
    gate3 = gate_nc11.reshape(n, 1, c_in)    # (N, 1, C_in)
    w2 = w_oi11.reshape(c_out, c_in)         # (C_out, C_in)

    # Choose the spatial tile from a VMEM budget (double-buffered in/out tiles
    # plus the resident weight).  Prefer a single full-extent block when it
    # fits — at this shape that is ~3.3 MB, far under the 32 MiB default
    # scoped VMEM on every generation (v7x included).
    fixed = 2 * c_out * c_in * itemsize + 2 * c_in * itemsize
    per_col = 2 * (c_in + c_out) * itemsize
    tm_max = max(128, (vmem_budget_bytes - fixed) // per_col)
    if m <= tm_max:
        tm = m                                   # full extent: always legal
    else:
        tm = max(128, (tm_max // 128) * 128)     # lane-aligned 128-multiple tile
    grid_m = pl.cdiv(m, tm)

    cost = pl.CostEstimate(
        flops=2 * n * c_out * c_in * m,
        transcendentals=n * c_in,
        bytes_accessed=itemsize * (n * c_in * m + c_out * c_in + n * c_in + n * c_out * m),
    )

    out3 = pl.pallas_call(
        se_gate_conv1x1_kernel,
        out_shape=jax.ShapeDtypeStruct((n, c_out, m), x_nchw.dtype),
        grid=(n, grid_m),
        in_specs=[
            pl.BlockSpec((None, 1, c_in), lambda b, i: (b, 0, 0)),   # gate
            pl.BlockSpec((c_out, c_in), lambda b, i: (0, 0)),        # weight (invariant)
            pl.BlockSpec((None, c_in, tm), lambda b, i: (b, 0, i)),  # activations
        ],
        out_specs=pl.BlockSpec((None, c_out, tm), lambda b, i: (b, 0, i)),
        compiler_params=pltpu.CompilerParams(
            # Shard only the batch axis across TensorCores (v7x); never force
            # an uneven 2-way split of the spatial axis.
            dimension_semantics=("parallel", "arbitrary"),
        ),
        cost_estimate=cost,
    )(gate3, w2, x3)

    # (N, C_out, M) -> NCHW, again a free contiguous reshape.
    return out3.reshape(n, c_out, h, w)


def reference(x_nchw, gate_nc11, w_oi11):
    xg = jax.nn.sigmoid(gate_nc11) * x_nchw                       # (N, Cin, H, W)
    w2 = w_oi11.reshape(w_oi11.shape[0], w_oi11.shape[1])         # (Cout, Cin)
    return jnp.einsum("nchw,oc->nohw", xg, w2)


if __name__ == "__main__":
    key = jax.random.PRNGKey(0)
    k_x, k_g, k_w = jax.random.split(key, 3)

    # Shapes from the PyTorch module (already small: ~1.7 MB working set).
    N, C_IN, H, W = 1, 432, 28, 28
    C_OUT = 72

    x170 = jax.random.normal(k_x, (N, C_IN, H, W), dtype=jnp.float32)
    x174 = jax.random.normal(k_g, (N, C_IN, 1, 1), dtype=jnp.float32)
    # Conv2d(432, 72, kernel_size=1, bias=False) weight: (C_out, C_in, 1, 1)
    conv_w = jax.random.normal(k_w, (C_OUT, C_IN, 1, 1), dtype=jnp.float32) * 0.05

    out = se_gate_conv1x1(x170, x174, conv_w)
    out = jax.block_until_ready(out)

    ref = reference(x170, x174, conv_w)
    assert out.shape == (N, C_OUT, H, W), out.shape
    assert jnp.allclose(out, ref, atol=1e-4, rtol=1e-4), float(jnp.max(jnp.abs(out - ref)))

    print("KERNEL_OK")
</pallas_src>

<mosaic_0001>
module attributes {stable_mosaic.version = 11 : i64} {
  func.func @se_gate_conv1x1_kernel(%arg0: i32, %arg1: i32, %arg2: memref<1x1x432xf32, #tpu.memory_space<vmem>>, %arg3: memref<72x432xf32, #tpu.memory_space<vmem>>, %arg4: memref<1x432x784xf32, #tpu.memory_space<vmem>>, %arg5: memref<1x72x784xf32, #tpu.memory_space<vmem>>) attributes {dimension_semantics = [#tpu.dimension_semantics<parallel>, #tpu.dimension_semantics<arbitrary>], iteration_bounds = array<i64: 1, 1>, scalar_prefetch = 0 : i64, scratch_operands = 0 : i64, tpu.core_type = #tpu.core_type<tc>, window_params = [{transform_indices = @transform_0, window_bounds = array<i64: 1, 1, 432>}, {pipeline_mode = #tpu.pipeline_mode<synchronous>, transform_indices = @transform_1, window_bounds = array<i64: 72, 432>}, {transform_indices = @transform_2, window_bounds = array<i64: 1, 432, 784>}, {transform_indices = @transform_3, window_bounds = array<i64: 1, 72, 784>}]} {
    %c0 = arith.constant 0 : index
    %c0_0 = arith.constant 0 : index
    %c0_1 = arith.constant 0 : index
    %0 = vector.load %arg2[%c0, %c0_0, %c0_1] : memref<1x1x432xf32, #tpu.memory_space<vmem>>, vector<1x1x432xf32>
    %1 = vector.shape_cast %0 : vector<1x1x432xf32> to vector<1x432xf32>
    %2 = arith.negf %1 : vector<1x432xf32>
    %3 = math.exp %2 : vector<1x432xf32>
    %cst = arith.constant 1.000000e+00 : f32
    %4 = vector.broadcast %cst : f32 to vector<1x432xf32>
    %5 = arith.addf %4, %3 : vector<1x432xf32>
    %6 = arith.divf %4, %5 : vector<1x432xf32>
    %c0_2 = arith.constant 0 : index
    %c0_3 = arith.constant 0 : index
    %7 = vector.load %arg3[%c0_2, %c0_3] : memref<72x432xf32, #tpu.memory_space<vmem>>, vector<72x432xf32>
    %8 = vector.broadcast %6 : vector<1x432xf32> to vector<72x432xf32>
    %9 = arith.mulf %7, %8 : vector<72x432xf32>
    %c0_4 = arith.constant 0 : index
    %c0_5 = arith.constant 0 : index
    %c0_6 = arith.constant 0 : index
    %10 = vector.load %arg4[%c0_4, %c0_5, %c0_6] : memref<1x432x784xf32, #tpu.memory_space<vmem>>, vector<1x432x784xf32>
    %11 = vector.shape_cast %10 : vector<1x432x784xf32> to vector<432x784xf32>
    %cst_7 = arith.constant dense<0.000000e+00> : vector<72x784xf32>
    %12 = tpu.matmul %9, %11, %cst_7 {dimension_numbers = #tpu.dot_dimension_numbers<[1], [0], [0], [1], [0, 0, 1, 1], [], []>} : vector<72x432xf32>, vector<432x784xf32>, vector<72x784xf32> -> vector<72x784xf32>
    %c0_8 = arith.constant 0 : index
    %c0_9 = arith.constant 0 : index
    %c0_10 = arith.constant 0 : index
    %13 = vector.load %arg5[%c0_8, %c0_9, %c0_10] : memref<1x72x784xf32, #tpu.memory_space<vmem>>, vector<1x72x784xf32>
    %14 = vector.shape_cast %13 : vector<1x72x784xf32> to vector<72x784xf32>
    %15 = vector.shape_cast %12 : vector<72x784xf32> to vector<1x72x784xf32>
    tpu.vector_store %arg5[%c0_8, %c0_9, %c0_10], %15 {strides = array<i32>} : memref<1x72x784xf32, #tpu.memory_space<vmem>>, vector<1x72x784xf32>,
    return
  }
  func.func @transform_0(%arg0: i32, %arg1: i32) -> (i32, i32, i32) {
    %c0_i32 = arith.constant 0 : i32
    %c0_i32_0 = arith.constant 0 : i32
    %c0_i32_1 = arith.constant 0 : i32
    return %arg0, %c0_i32, %c0_i32_0 : i32, i32, i32
  }
  func.func @transform_1(%arg0: i32, %arg1: i32) -> (i32, i32) {
    %c0_i32 = arith.constant 0 : i32
    %c0_i32_0 = arith.constant 0 : i32
    %c0_i32_1 = arith.constant 0 : i32
    return %c0_i32, %c0_i32_0 : i32, i32
  }
  func.func @transform_2(%arg0: i32, %arg1: i32) -> (i32, i32, i32) {
    %c0_i32 = arith.constant 0 : i32
    %c0_i32_0 = arith.constant 0 : i32
    return %arg0, %c0_i32, %arg1 : i32, i32, i32
  }
  func.func @transform_3(%arg0: i32, %arg1: i32) -> (i32, i32, i32) {
    %c0_i32 = arith.constant 0 : i32
    %c0_i32_0 = arith.constant 0 : i32
    return %arg0, %c0_i32, %arg1 : i32, i32, i32
  }
}

</mosaic_0001>

<llo_original>
// kernel: tpu_custom_call.1
$region0: #{tpu_custom_call.1}
  #allocation0 [shape = 'u32[]', space=smem, size = 0x4, offset = 0x4, fixed_abs, tag = 'smem constant byte address 0x4 - core index']
  #allocation1 [shape = 'u32[144,128]{1,0:T(1,128)}', space=vmem, size = 0x12000, scoped, tag = 'internal scratch']
  %s0 = inlined_call_operand.hbm [shape: f32[1,1,432], index: 0, kind: input, shape index: {}]
  %s1 = inlined_call_operand.hbm [shape: f32[72,432], index: 1, kind: input, shape index: {}]
  %s2 = inlined_call_operand.hbm [shape: f32[1,432,784], index: 2, kind: input, shape index: {}]
  %s3 = inlined_call_operand.hbm [shape: f32[1,72,784], index: 3, kind: output, shape index: {}]
  %s4 = sld [smem:[#allocation0]]
  $region34: #{tpu_custom_call.1} parent=0
    _
  %s6 = ssub.s32 1, %s4
  %s7 = scalar_select 0, %s6, %s4
  $region1: #{tpu_custom_call.1} parent=0
    #allocation2 [shape = 'u8[2048]{0}', space=vmem, size = 0x800, scoped, tag = 'input window, operand 0, single buffered']
    #allocation3 [shape = 's32[1]{0}', space=sflag, size = 0x4, scoped, tag = 'scoped memory for tpu_custom_call.1']
    #allocation4 [shape = 's32[1]{0}', space=sflag, size = 0x4, scoped, tag = 'scoped memory for tpu_custom_call.1']
    #allocation5 [shape = 'u8[147456]{0}', space=vmem, size = 0x24000, scoped, tag = 'input window, operand 1, single buffered']
    #allocation6 [shape = 's32[1]{0}', space=sflag, size = 0x4, scoped, tag = 'scoped memory for tpu_custom_call.1']
    #allocation7 [shape = 'u8[1548288]{0}', space=vmem, size = 0x17a000, scoped, tag = 'input window, operand 2, single buffered']
    #allocation8 [shape = 'u8[258048]{0}', space=vmem, size = 0x3f000, scoped, tag = 'output window, operand 0, single buffered']
    %8 = vsyncpa [#allocation3], 0
    %9 = vsyncpa [#allocation6], 0
    %10 = vsyncpa [#allocation4], 0
    // Predicated region
    $region2: #{tpu_custom_call.1} parent=1 // pred_check
      _
    $region3: #{tpu_custom_call.1} parent=1 // pred_check_branch
      %12 = sbr.rel (0) target = $region5
    $region4: #{tpu_custom_call.1} parent=1 // pred_region
      %s14 = ssub.s32 64, 64
      %15 = vsyncadd [#allocation3], %s14
      %s17 = sshll.u32 [#allocation2], 4
      %s18 = int_to_ptr.vmem [resolvable:$true] %s17
      %20 = dma.hbm_to_vmem [thread:$0]  %s0, 64, %s18, [#allocation3]
    $region5: #{tpu_custom_call.1} parent=1 // pred_fallthru
      _
    // Predicated region
    $region6: #{tpu_custom_call.1} parent=1 // pred_check
      _
    $region7: #{tpu_custom_call.1} parent=1 // pred_check_branch
      %22 = sbr.rel (0) target = $region9
    $region8: #{tpu_custom_call.1} parent=1 // pred_region
      %s24 = ssub.s32 4608, 4608
      %25 = vsyncadd [#allocation6], %s24
      %s26 = sshll.u32 [#allocation5], 4
      %s27 = int_to_ptr.vmem [resolvable:$true] %s26
      %32 = dma.hbm_to_vmem [thread:$0]  %s1, 4608, %s27, [#allocation6], 512, 512, 32
    $region9: #{tpu_custom_call.1} parent=1 // pred_fallthru
      _
    // Predicated region
    $region10: #{tpu_custom_call.1} parent=1 // pred_check
      _
    $region11: #{tpu_custom_call.1} parent=1 // pred_check_branch
      %34 = sbr.rel (0) target = $region13
    $region12: #{tpu_custom_call.1} parent=1 // pred_region
      %s36 = ssub.s32 48384, 48384
      %37 = vsyncadd [#allocation6], %s36
      %s38 = sshll.u32 [#allocation7], 4
      %s39 = int_to_ptr.vmem [resolvable:$true] %s38
      %44 = dma.hbm_to_vmem [thread:$0]  %s2, 48384, %s39, [#allocation6], 896, 896, 56
    $region13: #{tpu_custom_call.1} parent=1 // pred_fallthru
      _
    // Predicated region
    $region14: #{tpu_custom_call.1} parent=1 // pred_check
      _
    $region15: #{tpu_custom_call.1} parent=1 // pred_check_branch
      %46 = sbr.rel (0) target = $region17
    $region16: #{tpu_custom_call.1} parent=1 // pred_region
      %47 = dma.done [#allocation3], 64
    $region17: #{tpu_custom_call.1} parent=1 // pred_fallthru
      _
    // Predicated region
    $region18: #{tpu_custom_call.1} parent=1 // pred_check
      _
    $region19: #{tpu_custom_call.1} parent=1 // pred_check_branch
      %49 = sbr.rel (0) target = $region21
    $region20: #{tpu_custom_call.1} parent=1 // pred_region
      %50 = dma.done [#allocation6], 4608
    $region21: #{tpu_custom_call.1} parent=1 // pred_fallthru
      _
    // Predicated region
    $region22: #{tpu_custom_call.1} parent=1 // pred_check
      _
    $region23: #{tpu_custom_call.1} parent=1 // pred_check_branch
      %52 = sbr.rel (0) target = $region25
    $region24: #{tpu_custom_call.1} parent=1 // pred_region
      %53 = dma.done [#allocation6], 48384
    $region25: #{tpu_custom_call.1} parent=1 // pred_fallthru
      _
    %v54 = vld [vmem:[#allocation2] sm:$0xf]
    %v55 = vxor.u32 %v54, 2147483648
    %v56 = vmul.f32 %v55, 1.442695
    %v57 = vpow.pop %v56
    %v58 = vadd.f32 %v57, 1.0
    %v59 = vrcp.pop %v58
    %v60 = vmul.f32 1.0, %v59
    %v61 = vld [vmem:[#allocation5] sm:$0xff]
    %v62 = vld [vmem:[#allocation5 + $0x8] sm:$0xff]
    %v63 = vld [vmem:[#allocation5 + $0x10] sm:$0xff]
    %v64 = vld [vmem:[#allocation5 + $0x18] sm:$0xff]
    %v65 = vld [vmem:[#allocation5 + $0x20] sm:$0xff]
    %v66 = vld [vmem:[#allocation5 + $0x28] sm:$0xff]
    %v67 = vld [vmem:[#allocation5 + $0x30] sm:$0xff]
    %v68 = vld [vmem:[#allocation5 + $0x38] sm:$0xff]
    %v69 = vld [vmem:[#allocation5 + $0x40] sm:$0xff]
    %v70 = vld [vmem:[#allocation5 + $0x48] sm:$0xff]
    %v71 = vld [vmem:[#allocation5 + $0x50] sm:$0xff]
    %v72 = vld [vmem:[#allocation5 + $0x58] sm:$0xff]
    %v73 = vld [vmem:[#allocation5 + $0x60] sm:$0xff]
    %v74 = vld [vmem:[#allocation5 + $0x68] sm:$0xff]
    %v75 = vld [vmem:[#allocation5 + $0x70] sm:$0xff]
    %v76 = vld [vmem:[#allocation5 + $0x78] sm:$0xff]
    %v77 = vld [vmem:[#allocation5 + $0x80] sm:$0xff]
    %v78 = vld [vmem:[#allocation5 + $0x88] sm:$0xff]
    %v79 = vld [vmem:[#allocation5 + $0x90] sm:$0xff]
    %v80 = vld [vmem:[#allocation5 + $0x98] sm:$0xff]
    %v81 = vld [vmem:[#allocation5 + $0xa0] sm:$0xff]
    %v82 = vld [vmem:[#allocation5 + $0xa8] sm:$0xff]
    %v83 = vld [vmem:[#allocation5 + $0xb0] sm:$0xff]
    %v84 = vld [vmem:[#allocation5 + $0xb8] sm:$0xff]
    %v85 = vld [vmem:[#allocation5 + $0xc0] sm:$0xff]
    %v86 = vld [vmem:[#allocation5 + $0xc8] sm:$0xff]
    %v87 = vld [vmem:[#allocation5 + $0xd0] sm:$0xff]
    %v88 = vld [vmem:[#allocation5 + $0xd8] sm:$0xff]
    %v89 = vld [vmem:[#allocation5 + $0xe0] sm:$0xff]
    %v90 = vld [vmem:[#allocation5 + $0xe8] sm:$0xff]
    %v91 = vld [vmem:[#allocation5 + $0xf0] sm:$0xff]
    %v92 = vld [vmem:[#allocation5 + $0xf8] sm:$0xff]
    %v93 = vld [vmem:[#allocation5 + $0x100] sm:$0xff]
    %v94 = vld [vmem:[#allocation5 + $0x108] sm:$0xff]
    %v95 = vld [vmem:[#allocation5 + $0x110] sm:$0xff]
    %v96 = vld [vmem:[#allocation5 + $0x118] sm:$0xff]
    %v98 = vlaneseq
    %v99 = vshrl.u32 %v98, 7
    %v100 = vsub.s32 0, %v99
    %v101 = vrot.slane %v60, %v100
    %v102 = vlaneseq
    %v103 = vshrl.u32 %v102, 7
    %v104 = vsub.s32 1, %v103
    %v105 = vrot.slane %v60, %v104
    %v106 = vlaneseq
    %v107 = vshrl.u32 %v106, 7
    %v108 = vsub.s32 2, %v107
    %v109 = vrot.slane %v60, %v108
    %v110 = vlaneseq
    %v111 = vshrl.u32 %v110, 7
    %v112 = vsub.s32 3, %v111
    %v113 = vrot.slane %v60, %v112
    %v118 = vmul.f32 %v61, %v101
    %v119 = vmul.f32 %v62, %v105
    %v120 = vmul.f32 %v63, %v109
    %v121 = vmul.f32 %v64, %v113
    %v122 = vmul.f32 %v65, %v101
    %v123 = vmul.f32 %v66, %v105
    %v124 = vmul.f32 %v67, %v109
    %v125 = vmul.f32 %v68, %v113
    %v126 = vmul.f32 %v69, %v101
    %v127 = vmul.f32 %v70, %v105
    %v128 = vmul.f32 %v71, %v109
    %v129 = vmul.f32 %v72, %v113
    %v130 = vmul.f32 %v73, %v101
    %v131 = vmul.f32 %v74, %v105
    %v132 = vmul.f32 %v75, %v109
    %v133 = vmul.f32 %v76, %v113
    %v134 = vmul.f32 %v77, %v101
    %v135 = vmul.f32 %v78, %v105
    %v136 = vmul.f32 %v79, %v109
    %v137 = vmul.f32 %v80, %v113
    %v138 = vmul.f32 %v81, %v101
    %v139 = vmul.f32 %v82, %v105
    %v140 = vmul.f32 %v83, %v109
    %v141 = vmul.f32 %v84, %v113
    %v142 = vmul.f32 %v85, %v101
    %v143 = vmul.f32 %v86, %v105
    %v144 = vmul.f32 %v87, %v109
    %v145 = vmul.f32 %v88, %v113
    %v146 = vmul.f32 %v89, %v101
    %v147 = vmul.f32 %v90, %v105
    %v148 = vmul.f32 %v91, %v109
    %v149 = vmul.f32 %v92, %v113
    %v150 = vmul.f32 %v93, %v101
    %v151 = vmul.f32 %v94, %v105
    %v152 = vmul.f32 %v95, %v109
    %v153 = vmul.f32 %v96, %v113
    %v154 = vld [vmem:[#allocation7] sm:$0xff]
    %v155 = vld [vmem:[#allocation7 + $0x8] sm:$0xff]
    %v156 = vld [vmem:[#allocation7 + $0x10] sm:$0xff]
    %v157 = vld [vmem:[#allocation7 + $0x18] sm:$0xff]
    %v158 = vld [vmem:[#allocation7 + $0x20] sm:$0xff]
    %v159 = vld [vmem:[#allocation7 + $0x28] sm:$0xff]
    %v160 = vld [vmem:[#allocation7 + $0x30] sm:$0xff]
    %v161 = vld [vmem:[#allocation7 + $0x38] sm:$0xff]
    %v162 = vld [vmem:[#allocation7 + $0x40] sm:$0xff]
    %v163 = vld [vmem:[#allocation7 + $0x48] sm:$0xff]
    %v164 = vld [vmem:[#allocation7 + $0x50] sm:$0xff]
    %v165 = vld [vmem:[#allocation7 + $0x58] sm:$0xff]
    %v166 = vld [vmem:[#allocation7 + $0x60] sm:$0xff]
    %v167 = vld [vmem:[#allocation7 + $0x68] sm:$0xff]
    %v168 = vld [vmem:[#allocation7 + $0x70] sm:$0xff]
    %v169 = vld [vmem:[#allocation7 + $0x78] sm:$0xff]
    %v170 = vld [vmem:[#allocation7 + $0x80] sm:$0xff]
    %v171 = vld [vmem:[#allocation7 + $0x88] sm:$0xff]
    %v172 = vld [vmem:[#allocation7 + $0x90] sm:$0xff]
    %v173 = vld [vmem:[#allocation7 + $0x98] sm:$0xff]
    %v174 = vld [vmem:[#allocation7 + $0xa0] sm:$0xff]
    %v175 = vld [vmem:[#allocation7 + $0xa8] sm:$0xff]
    %v176 = vld [vmem:[#allocation7 + $0xb0] sm:$0xff]
    %v177 = vld [vmem:[#allocation7 + $0xb8] sm:$0xff]
    %v178 = vld [vmem:[#allocation7 + $0xc0] sm:$0xff]
    %v179 = vld [vmem:[#allocation7 + $0xc8] sm:$0xff]
    %v180 = vld [vmem:[#allocation7 + $0xd0] sm:$0xff]
    %v181 = vld [vmem:[#allocation7 + $0xd8] sm:$0xff]
    %v182 = vld [vmem:[#allocation7 + $0xe0] sm:$0xff]
    %v183 = vld [vmem:[#allocation7 + $0xe8] sm:$0xff]
    %v184 = vld [vmem:[#allocation7 + $0xf0] sm:$0xff]
    %v185 = vld [vmem:[#allocation7 + $0xf8] sm:$0xff]
    %v186 = vld [vmem:[#allocation7 + $0x100] sm:$0xff]
    %v187 = vld [vmem:[#allocation7 + $0x108] sm:$0xff]
    %v188 = vld [vmem:[#allocation7 + $0x110] sm:$0xff]
    %v189 = vld [vmem:[#allocation7 + $0x118] sm:$0xff]
    %v190 = vld [vmem:[#allocation7 + $0x120] sm:$0xff]
    %v191 = vld [vmem:[#allocation7 + $0x128] sm:$0xff]
    %v192 = vld [vmem:[#allocation7 + $0x130] sm:$0xff]
    %v193 = vld [vmem:[#allocation7 + $0x138] sm:$0xff]
    %v194 = vld [vmem:[#allocation7 + $0x140] sm:$0xff]
    %v195 = vld [vmem:[#allocation7 + $0x148] sm:$0xff]
    %v196 = vld [vmem:[#allocation7 + $0x150] sm:$0xff]
    %v197 = vld [vmem:[#allocation7 + $0x158] sm:$0xff]
    %v198 = vld [vmem:[#allocation7 + $0x160] sm:$0xff]
    %v199 = vld [vmem:[#allocation7 + $0x168] sm:$0xff]
    %v200 = vld [vmem:[#allocation7 + $0x170] sm:$0xff]
    %v201 = vld [vmem:[#allocation7 + $0x178] sm:$0xff]
    %v202 = vld [vmem:[#allocation7 + $0x180] sm:$0xff]
    %v203 = vld [vmem:[#allocation7 + $0x188] sm:$0xff]
    %v204 = vld [vmem:[#allocation7 + $0x190] sm:$0xff]
    %v205 = vld [vmem:[#allocation7 + $0x198] sm:$0xff]
    %v206 = vld [vmem:[#allocation7 + $0x1a0] sm:$0xff]
    %v207 = vld [vmem:[#allocation7 + $0x1a8] sm:$0xff]
    %v208 = vld [vmem:[#allocation7 + $0x1b0] sm:$0xff]
    %v209 = vld [vmem:[#allocation7 + $0x1b8] sm:$0xff]
    %v210 = vld [vmem:[#allocation7 + $0x1c0] sm:$0xff]
    %v211 = vld [vmem:[#allocation7 + $0x1c8] sm:$0xff]
    %v212 = vld [vmem:[#allocation7 + $0x1d0] sm:$0xff]
    %v213 = vld [vmem:[#allocation7 + $0x1d8] sm:$0xff]
    %v214 = vld [vmem:[#allocation7 + $0x1e0] sm:$0xff]
    %v215 = vld [vmem:[#allocation7 + $0x1e8] sm:$0xff]
    %v216 = vld [vmem:[#allocation7 + $0x1f0] sm:$0xff]
    %v217 = vld [vmem:[#allocation7 + $0x1f8] sm:$0xff]
    %v218 = vld [vmem:[#allocation7 + $0x200] sm:$0xff]
    %v219 = vld [vmem:[#allocation7 + $0x208] sm:$0xff]
    %v220 = vld [vmem:[#allocation7 + $0x210] sm:$0xff]
    %v221 = vld [vmem:[#allocation7 + $0x218] sm:$0xff]
    %v222 = vld [vmem:[#allocation7 + $0x220] sm:$0xff]
    %v223 = vld [vmem:[#allocation7 + $0x228] sm:$0xff]
    %v224 = vld [vmem:[#allocation7 + $0x230] sm:$0xff]
    %v225 = vld [vmem:[#allocation7 + $0x238] sm:$0xff]
    %v226 = vld [vmem:[#allocation7 + $0x240] sm:$0xff]
    %v227 = vld [vmem:[#allocation7 + $0x248] sm:$0xff]
    %v228 = vld [vmem:[#allocation7 + $0x250] sm:$0xff]
    %v229 = vld [vmem:[#allocation7 + $0x258] sm:$0xff]
    %v230 = vld [vmem:[#allocation7 + $0x260] sm:$0xff]
    %v231 = vld [vmem:[#allocation7 + $0x268] sm:$0xff]
    %v232 = vld [vmem:[#allocation7 + $0x270] sm:$0xff]
    %v233 = vld [vmem:[#allocation7 + $0x278] sm:$0xff]
    %v234 = vld [vmem:[#allocation7 + $0x280] sm:$0xff]
    %v235 = vld [vmem:[#allocation7 + $0x288] sm:$0xff]
    %v236 = vld [vmem:[#allocation7 + $0x290] sm:$0xff]
    %v237 = vld [vmem:[#allocation7 + $0x298] sm:$0xff]
    %v238 = vld [vmem:[#allocation7 + $0x2a0] sm:$0xff]
    %v239 = vld [vmem:[#allocation7 + $0x2a8] sm:$0xff]
    %v240 = vld [vmem:[#allocation7 + $0x2b0] sm:$0xff]
    %v241 = vld [vmem:[#allocation7 + $0x2b8] sm:$0xff]
    %v242 = vld [vmem:[#allocation7 + $0x2c0] sm:$0xff]
    %v243 = vld [vmem:[#allocation7 + $0x2c8] sm:$0xff]
    %v244 = vld [vmem:[#allocation7 + $0x2d0] sm:$0xff]
    %v245 = vld [vmem:[#allocation7 + $0x2d8] sm:$0xff]
    %v246 = vld [vmem:[#allocation7 + $0x2e0] sm:$0xff]
    %v247 = vld [vmem:[#allocation7 + $0x2e8] sm:$0xff]
    %v248 = vld [vmem:[#allocation7 + $0x2f0] sm:$0xff]
    %v249 = vld [vmem:[#allocation7 + $0x2f8] sm:$0xff]
    %v250 = vld [vmem:[#allocation7 + $0x300] sm:$0xff]
    %v251 = vld [vmem:[#allocation7 + $0x308] sm:$0xff]
    %v252 = vld [vmem:[#allocation7 + $0x310] sm:$0xff]
    %v253 = vld [vmem:[#allocation7 + $0x318] sm:$0xff]
    %v254 = vld [vmem:[#allocation7 + $0x320] sm:$0xff]
    %v255 = vld [vmem:[#allocation7 + $0x328] sm:$0xff]
    %v256 = vld [vmem:[#allocation7 + $0x330] sm:$0xff]
    %v257 = vld [vmem:[#allocation7 + $0x338] sm:$0xff]
    %v258 = vld [vmem:[#allocation7 + $0x340] sm:$0xff]
    %v259 = vld [vmem:[#allocation7 + $0x348] sm:$0xff]
    %v260 = vld [vmem:[#allocation7 + $0x350] sm:$0xff]
    %v261 = vld [vmem:[#allocation7 + $0x358] sm:$0xff]
    %v262 = vld [vmem:[#allocation7 + $0x360] sm:$0xff]
    %v263 = vld [vmem:[#allocation7 + $0x368] sm:$0xff]
    %v264 = vld [vmem:[#allocation7 + $0x370] sm:$0xff]
    %v265 = vld [vmem:[#allocation7 + $0x378] sm:$0xff]
    %v266 = vld [vmem:[#allocation7 + $0x380] sm:$0xff]
    %v267 = vld [vmem:[#allocation7 + $0x388] sm:$0xff]
    %v268 = vld [vmem:[#allocation7 + $0x390] sm:$0xff]
    %v269 = vld [vmem:[#allocation7 + $0x398] sm:$0xff]
    %v270 = vld [vmem:[#allocation7 + $0x3a0] sm:$0xff]
    %v271 = vld [vmem:[#allocation7 + $0x3a8] sm:$0xff]
    %v272 = vld [vmem:[#allocation7 + $0x3b0] sm:$0xff]
    %v273 = vld [vmem:[#allocation7 + $0x3b8] sm:$0xff]
    %v274 = vld [vmem:[#allocation7 + $0x3c0] sm:$0xff]
    %v275 = vld [vmem:[#allocation7 + $0x3c8] sm:$0xff]
    %v276 = vld [vmem:[#allocation7 + $0x3d0] sm:$0xff]
    %v277 = vld [vmem:[#allocation7 + $0x3d8] sm:$0xff]
    %v278 = vld [vmem:[#allocation7 + $0x3e0] sm:$0xff]
    %v279 = vld [vmem:[#allocation7 + $0x3e8] sm:$0xff]
    %v280 = vld [vmem:[#allocation7 + $0x3f0] sm:$0xff]
    %v281 = vld [vmem:[#allocation7 + $0x3f8] sm:$0xff]
    %v282 = vld [vmem:[#allocation7 + $0x400] sm:$0xff]
    %v283 = vld [vmem:[#allocation7 + $0x408] sm:$0xff]
    %v284 = vld [vmem:[#allocation7 + $0x410] sm:$0xff]
    %v285 = vld [vmem:[#allocation7 + $0x418] sm:$0xff]
    %v286 = vld [vmem:[#allocation7 + $0x420] sm:$0xff]
    %v287 = vld [vmem:[#allocation7 + $0x428] sm:$0xff]
    %v288 = vld [vmem:[#allocation7 + $0x430] sm:$0xff]
    %v289 = vld [vmem:[#allocation7 + $0x438] sm:$0xff]
    %v290 = vld [vmem:[#allocation7 + $0x440] sm:$0xff]
    %v291 = vld [vmem:[#allocation7 + $0x448] sm:$0xff]
    %v292 = vld [vmem:[#allocation7 + $0x450] sm:$0xff]
    %v293 = vld [vmem:[#allocation7 + $0x458] sm:$0xff]
    %v294 = vld [vmem:[#allocation7 + $0x460] sm:$0xff]
    %v295 = vld [vmem:[#allocation7 + $0x468] sm:$0xff]
    %v296 = vld [vmem:[#allocation7 + $0x470] sm:$0xff]
    %v297 = vld [vmem:[#allocation7 + $0x478] sm:$0xff]
    %v298 = vld [vmem:[#allocation7 + $0x480] sm:$0xff]
    %v299 = vld [vmem:[#allocation7 + $0x488] sm:$0xff]
    %v300 = vld [vmem:[#allocation7 + $0x490] sm:$0xff]
    %v301 = vld [vmem:[#allocation7 + $0x498] sm:$0xff]
    %v302 = vld [vmem:[#allocation7 + $0x4a0] sm:$0xff]
    %v303 = vld [vmem:[#allocation7 + $0x4a8] sm:$0xff]
    %v304 = vld [vmem:[#allocation7 + $0x4b0] sm:$0xff]
    %v305 = vld [vmem:[#allocation7 + $0x4b8] sm:$0xff]
    %v306 = vld [vmem:[#allocation7 + $0x4c0] sm:$0xff]
    %v307 = vld [vmem:[#allocation7 + $0x4c8] sm:$0xff]
    %v308 = vld [vmem:[#allocation7 + $0x4d0] sm:$0xff]
    %v309 = vld [vmem:[#allocation7 + $0x4d8] sm:$0xff]
    %v310 = vld [vmem:[#allocation7 + $0x4e0] sm:$0xff]
    %v311 = vld [vmem:[#allocation7 + $0x4e8] sm:$0xff]
    %v312 = vld [vmem:[#allocation7 + $0x4f0] sm:$0xff]
    %v313 = vld [vmem:[#allocation7 + $0x4f8] sm:$0xff]
    %v314 = vld [vmem:[#allocation7 + $0x500] sm:$0xff]
    %v315 = vld [vmem:[#allocation7 + $0x508] sm:$0xff]
    %v316 = vld [vmem:[#allocation7 + $0x510] sm:$0xff]
    %v317 = vld [vmem:[#allocation7 + $0x518] sm:$0xff]
    %v318 = vld [vmem:[#allocation7 + $0x520] sm:$0xff]
    %v319 = vld [vmem:[#allocation7 + $0x528] sm:$0xff]
    %v320 = vld [vmem:[#allocation7 + $0x530] sm:$0xff]
    %v321 = vld [vmem:[#allocation7 + $0x538] sm:$0xff]
    %v322 = vld [vmem:[#allocation7 + $0x540] sm:$0xff]
    %v323 = vld [vmem:[#allocation7 + $0x548] sm:$0xff]
    %v324 = vld [vmem:[#allocation7 + $0x550] sm:$0xff]
    %v325 = vld [vmem:[#allocation7 + $0x558] sm:$0xff]
    %v326 = vld [vmem:[#allocation7 + $0x560] sm:$0xff]
    %v327 = vld [vmem:[#allocation7 + $0x568] sm:$0xff]
    %v328 = vld [vmem:[#allocation7 + $0x570] sm:$0xff]
    %v329 = vld [vmem:[#allocation7 + $0x578] sm:$0xff]
    %v330 = vld [vmem:[#allocation7 + $0x580] sm:$0xff]
    %v331 = vld [vmem:[#allocation7 + $0x588] sm:$0xff]
    %v332 = vld [vmem:[#allocation7 + $0x590] sm:$0xff]
    %v333 = vld [vmem:[#allocation7 + $0x598] sm:$0xff]
    %v334 = vld [vmem:[#allocation7 + $0x5a0] sm:$0xff]
    %v335 = vld [vmem:[#allocation7 + $0x5a8] sm:$0xff]
    %v336 = vld [vmem:[#allocation7 + $0x5b0] sm:$0xff]
    %v337 = vld [vmem:[#allocation7 + $0x5b8] sm:$0xff]
    %v338 = vld [vmem:[#allocation7 + $0x5c0] sm:$0xff]
    %v339 = vld [vmem:[#allocation7 + $0x5c8] sm:$0xff]
    %v340 = vld [vmem:[#allocation7 + $0x5d0] sm:$0xff]
    %v341 = vld [vmem:[#allocation7 + $0x5d8] sm:$0xff]
    %v342 = vld [vmem:[#allocation7 + $0x5e0] sm:$0xff]
    %v343 = vld [vmem:[#allocation7 + $0x5e8] sm:$0xff]
    %v344 = vld [vmem:[#allocation7 + $0x5f0] sm:$0xff]
    %v345 = vld [vmem:[#allocation7 + $0x5f8] sm:$0xff]
    %v346 = vld [vmem:[#allocation7 + $0x600] sm:$0xff]
    %v347 = vld [vmem:[#allocation7 + $0x608] sm:$0xff]
    %v348 = vld [vmem:[#allocation7 + $0x610] sm:$0xff]
    %v349 = vld [vmem:[#allocation7 + $0x618] sm:$0xff]
    %v350 = vld [vmem:[#allocation7 + $0x620] sm:$0xff]
    %v351 = vld [vmem:[#allocation7 + $0x628] sm:$0xff]
    %v352 = vld [vmem:[#allocation7 + $0x630] sm:$0xff]
    %v353 = vld [vmem:[#allocation7 + $0x638] sm:$0xff]
    %v354 = vld [vmem:[#allocation7 + $0x640] sm:$0xff]
    %v355 = vld [vmem:[#allocation7 + $0x648] sm:$0xff]
    %v356 = vld [vmem:[#allocation7 + $0x650] sm:$0xff]
    %v357 = vld [vmem:[#allocation7 + $0x658] sm:$0xff]
    %v358 = vld [vmem:[#allocation7 + $0x660] sm:$0xff]
    %v359 = vld [vmem:[#allocation7 + $0x668] sm:$0xff]
    %v360 = vld [vmem:[#allocation7 + $0x670] sm:$0xff]
    %v361 = vld [vmem:[#allocation7 + $0x678] sm:$0xff]
    %v362 = vld [vmem:[#allocation7 + $0x680] sm:$0xff]
    %v363 = vld [vmem:[#allocation7 + $0x688] sm:$0xff]
    %v364 = vld [vmem:[#allocation7 + $0x690] sm:$0xff]
    %v365 = vld [vmem:[#allocation7 + $0x698] sm:$0xff]
    %v366 = vld [vmem:[#allocation7 + $0x6a0] sm:$0xff]
    %v367 = vld [vmem:[#allocation7 + $0x6a8] sm:$0xff]
    %v368 = vld [vmem:[#allocation7 + $0x6b0] sm:$0xff]
    %v369 = vld [vmem:[#allocation7 + $0x6b8] sm:$0xff]
    %v370 = vld [vmem:[#allocation7 + $0x6c0] sm:$0xff]
    %v371 = vld [vmem:[#allocation7 + $0x6c8] sm:$0xff]
    %v372 = vld [vmem:[#allocation7 + $0x6d0] sm:$0xff]
    %v373 = vld [vmem:[#allocation7 + $0x6d8] sm:$0xff]
    %v374 = vld [vmem:[#allocation7 + $0x6e0] sm:$0xff]
    %v375 = vld [vmem:[#allocation7 + $0x6e8] sm:$0xff]
    %v376 = vld [vmem:[#allocation7 + $0x6f0] sm:$0xff]
    %v377 = vld [vmem:[#allocation7 + $0x6f8] sm:$0xff]
    %v378 = vld [vmem:[#allocation7 + $0x700] sm:$0xff]
    %v379 = vld [vmem:[#allocation7 + $0x708] sm:$0xff]
    %v380 = vld [vmem:[#allocation7 + $0x710] sm:$0xff]
    %v381 = vld [vmem:[#allocation7 + $0x718] sm:$0xff]
    %v382 = vld [vmem:[#allocation7 + $0x720] sm:$0xff]
    %v383 = vld [vmem:[#allocation7 + $0x728] sm:$0xff]
    %v384 = vld [vmem:[#allocation7 + $0x730] sm:$0xff]
    %v385 = vld [vmem:[#allocation7 + $0x738] sm:$0xff]
    %v386 = vld [vmem:[#allocation7 + $0x740] sm:$0xff]
    %v387 = vld [vmem:[#allocation7 + $0x748] sm:$0xff]
    %v388 = vld [vmem:[#allocation7 + $0x750] sm:$0xff]
    %v389 = vld [vmem:[#allocation7 + $0x758] sm:$0xff]
    %v390 = vld [vmem:[#allocation7 + $0x760] sm:$0xff]
    %v391 = vld [vmem:[#allocation7 + $0x768] sm:$0xff]
    %v392 = vld [vmem:[#allocation7 + $0x770] sm:$0xff]
    %v393 = vld [vmem:[#allocation7 + $0x778] sm:$0xff]
    %v394 = vld [vmem:[#allocation7 + $0x780] sm:$0xff]
    %v395 = vld [vmem:[#allocation7 + $0x788] sm:$0xff]
    %v396 = vld [vmem:[#allocation7 + $0x790] sm:$0xff]
    %v397 = vld [vmem:[#allocation7 + $0x798] sm:$0xff]
    %v398 = vld [vmem:[#allocation7 + $0x7a0] sm:$0xff]
    %v399 = vld [vmem:[#allocation7 + $0x7a8] sm:$0xff]
    %v400 = vld [vmem:[#allocation7 + $0x7b0] sm:$0xff]
    %v401 = vld [vmem:[#allocation7 + $0x7b8] sm:$0xff]
    %v402 = vld [vmem:[#allocation7 + $0x7c0] sm:$0xff]
    %v403 = vld [vmem:[#allocation7 + $0x7c8] sm:$0xff]
    %v404 = vld [vmem:[#allocation7 + $0x7d0] sm:$0xff]
    %v405 = vld [vmem:[#allocation7 + $0x7d8] sm:$0xff]
    %v406 = vld [vmem:[#allocation7 + $0x7e0] sm:$0xff]
    %v407 = vld [vmem:[#allocation7 + $0x7e8] sm:$0xff]
    %v408 = vld [vmem:[#allocation7 + $0x7f0] sm:$0xff]
    %v409 = vld [vmem:[#allocation7 + $0x7f8] sm:$0xff]
    %v410 = vld [vmem:[#allocation7 + $0x800] sm:$0xff]
    %v411 = vld [vmem:[#allocation7 + $0x808] sm:$0xff]
    %v412 = vld [vmem:[#allocation7 + $0x810] sm:$0xff]
    %v413 = vld [vmem:[#allocation7 + $0x818] sm:$0xff]
    %v414 = vld [vmem:[#allocation7 + $0x820] sm:$0xff]
    %v415 = vld [vmem:[#allocation7 + $0x828] sm:$0xff]
    %v416 = vld [vmem:[#allocation7 + $0x830] sm:$0xff]
    %v417 = vld [vmem:[#allocation7 + $0x838] sm:$0xff]
    %v418 = vld [vmem:[#allocation7 + $0x840] sm:$0xff]
    %v419 = vld [vmem:[#allocation7 + $0x848] sm:$0xff]
    %v420 = vld [vmem:[#allocation7 + $0x850] sm:$0xff]
    %v421 = vld [vmem:[#allocation7 + $0x858] sm:$0xff]
    %v422 = vld [vmem:[#allocation7 + $0x860] sm:$0xff]
    %v423 = vld [vmem:[#allocation7 + $0x868] sm:$0xff]
    %v424 = vld [vmem:[#allocation7 + $0x870] sm:$0xff]
    %v425 = vld [vmem:[#allocation7 + $0x878] sm:$0xff]
    %v426 = vld [vmem:[#allocation7 + $0x880] sm:$0xff]
    %v427 = vld [vmem:[#allocation7 + $0x888] sm:$0xff]
    %v428 = vld [vmem:[#allocation7 + $0x890] sm:$0xff]
    %v429 = vld [vmem:[#allocation7 + $0x898] sm:$0xff]
    %v430 = vld [vmem:[#allocation7 + $0x8a0] sm:$0xff]
    %v431 = vld [vmem:[#allocation7 + $0x8a8] sm:$0xff]
    %v432 = vld [vmem:[#allocation7 + $0x8b0] sm:$0xff]
    %v433 = vld [vmem:[#allocation7 + $0x8b8] sm:$0xff]
    %v434 = vld [vmem:[#allocation7 + $0x8c0] sm:$0xff]
    %v435 = vld [vmem:[#allocation7 + $0x8c8] sm:$0xff]
    %v436 = vld [vmem:[#allocation7 + $0x8d0] sm:$0xff]
    %v437 = vld [vmem:[#allocation7 + $0x8d8] sm:$0xff]
    %v438 = vld [vmem:[#allocation7 + $0x8e0] sm:$0xff]
    %v439 = vld [vmem:[#allocation7 + $0x8e8] sm:$0xff]
    %v440 = vld [vmem:[#allocation7 + $0x8f0] sm:$0xff]
    %v441 = vld [vmem:[#allocation7 + $0x8f8] sm:$0xff]
    %v442 = vld [vmem:[#allocation7 + $0x900] sm:$0xff]
    %v443 = vld [vmem:[#allocation7 + $0x908] sm:$0xff]
    %v444 = vld [vmem:[#allocation7 + $0x910] sm:$0xff]
    %v445 = vld [vmem:[#allocation7 + $0x918] sm:$0xff]
    %v446 = vld [vmem:[#allocation7 + $0x920] sm:$0xff]
    %v447 = vld [vmem:[#allocation7 + $0x928] sm:$0xff]
    %v448 = vld [vmem:[#allocation7 + $0x930] sm:$0xff]
    %v449 = vld [vmem:[#allocation7 + $0x938] sm:$0xff]
    %v450 = vld [vmem:[#allocation7 + $0x940] sm:$0xff]
    %v451 = vld [vmem:[#allocation7 + $0x948] sm:$0xff]
    %v452 = vld [vmem:[#allocation7 + $0x950] sm:$0xff]
    %v453 = vld [vmem:[#allocation7 + $0x958] sm:$0xff]
    %v454 = vld [vmem:[#allocation7 + $0x960] sm:$0xff]
    %v455 = vld [vmem:[#allocation7 + $0x968] sm:$0xff]
    %v456 = vld [vmem:[#allocation7 + $0x970] sm:$0xff]
    %v457 = vld [vmem:[#allocation7 + $0x978] sm:$0xff]
    %v458 = vld [vmem:[#allocation7 + $0x980] sm:$0xff]
    %v459 = vld [vmem:[#allocation7 + $0x988] sm:$0xff]
    %v460 = vld [vmem:[#allocation7 + $0x990] sm:$0xff]
    %v461 = vld [vmem:[#allocation7 + $0x998] sm:$0xff]
    %v462 = vld [vmem:[#allocation7 + $0x9a0] sm:$0xff]
    %v463 = vld [vmem:[#allocation7 + $0x9a8] sm:$0xff]
    %v464 = vld [vmem:[#allocation7 + $0x9b0] sm:$0xff]
    %v465 = vld [vmem:[#allocation7 + $0x9b8] sm:$0xff]
    %v466 = vld [vmem:[#allocation7 + $0x9c0] sm:$0xff]
    %v467 = vld [vmem:[#allocation7 + $0x9c8] sm:$0xff]
    %v468 = vld [vmem:[#allocation7 + $0x9d0] sm:$0xff]
    %v469 = vld [vmem:[#allocation7 + $0x9d8] sm:$0xff]
    %v470 = vld [vmem:[#allocation7 + $0x9e0] sm:$0xff]
    %v471 = vld [vmem:[#allocation7 + $0x9e8] sm:$0xff]
    %v472 = vld [vmem:[#allocation7 + $0x9f0] sm:$0xff]
    %v473 = vld [vmem:[#allocation7 + $0x9f8] sm:$0xff]
    %v474 = vld [vmem:[#allocation7 + $0xa00] sm:$0xff]
    %v475 = vld [vmem:[#allocation7 + $0xa08] sm:$0xff]
    %v476 = vld [vmem:[#allocation7 + $0xa10] sm:$0xff]
    %v477 = vld [vmem:[#allocation7 + $0xa18] sm:$0xff]
    %v478 = vld [vmem:[#allocation7 + $0xa20] sm:$0xff]
    %v479 = vld [vmem:[#allocation7 + $0xa28] sm:$0xff]
    %v480 = vld [vmem:[#allocation7 + $0xa30] sm:$0xff]
    %v481 = vld [vmem:[#allocation7 + $0xa38] sm:$0xff]
    %v482 = vld [vmem:[#allocation7 + $0xa40] sm:$0xff]
    %v483 = vld [vmem:[#allocation7 + $0xa48] sm:$0xff]
    %v484 = vld [vmem:[#allocation7 + $0xa50] sm:$0xff]
    %v485 = vld [vmem:[#allocation7 + $0xa58] sm:$0xff]
    %v486 = vld [vmem:[#allocation7 + $0xa60] sm:$0xff]
    %v487 = vld [vmem:[#allocation7 + $0xa68] sm:$0xff]
    %v488 = vld [vmem:[#allocation7 + $0xa70] sm:$0xff]
    %v489 = vld [vmem:[#allocation7 + $0xa78] sm:$0xff]
    %v490 = vld [vmem:[#allocation7 + $0xa80] sm:$0xff]
    %v491 = vld [vmem:[#allocation7 + $0xa88] sm:$0xff]
    %v492 = vld [vmem:[#allocation7 + $0xa90] sm:$0xff]
    %v493 = vld [vmem:[#allocation7 + $0xa98] sm:$0xff]
    %v494 = vld [vmem:[#allocation7 + $0xaa0] sm:$0xff]
    %v495 = vld [vmem:[#allocation7 + $0xaa8] sm:$0xff]
    %v496 = vld [vmem:[#allocation7 + $0xab0] sm:$0xff]
    %v497 = vld [vmem:[#allocation7 + $0xab8] sm:$0xff]
    %v498 = vld [vmem:[#allocation7 + $0xac0] sm:$0xff]
    %v499 = vld [vmem:[#allocation7 + $0xac8] sm:$0xff]
    %v500 = vld [vmem:[#allocation7 + $0xad0] sm:$0xff]
    %v501 = vld [vmem:[#allocation7 + $0xad8] sm:$0xff]
    %v502 = vld [vmem:[#allocation7 + $0xae0] sm:$0xff]
    %v503 = vld [vmem:[#allocation7 + $0xae8] sm:$0xff]
    %v504 = vld [vmem:[#allocation7 + $0xaf0] sm:$0xff]
    %v505 = vld [vmem:[#allocation7 + $0xaf8] sm:$0xff]
    %v506 = vld [vmem:[#allocation7 + $0xb00] sm:$0xff]
    %v507 = vld [vmem:[#allocation7 + $0xb08] sm:$0xff]
    %v508 = vld [vmem:[#allocation7 + $0xb10] sm:$0xff]
    %v509 = vld [vmem:[#allocation7 + $0xb18] sm:$0xff]
    %v510 = vld [vmem:[#allocation7 + $0xb20] sm:$0xff]
    %v511 = vld [vmem:[#allocation7 + $0xb28] sm:$0xff]
    %v512 = vld [vmem:[#allocation7 + $0xb30] sm:$0xff]
    %v513 = vld [vmem:[#allocation7 + $0xb38] sm:$0xff]
    %v514 = vld [vmem:[#allocation7 + $0xb40] sm:$0xff]
    %v515 = vld [vmem:[#allocation7 + $0xb48] sm:$0xff]
    %v516 = vld [vmem:[#allocation7 + $0xb50] sm:$0xff]
    %v517 = vld [vmem:[#allocation7 + $0xb58] sm:$0xff]
    %v518 = vld [vmem:[#allocation7 + $0xb60] sm:$0xff]
    %v519 = vld [vmem:[#allocation7 + $0xb68] sm:$0xff]
    %v520 = vld [vmem:[#allocation7 + $0xb70] sm:$0xff]
    %v521 = vld [vmem:[#allocation7 + $0xb78] sm:$0xff]
    %v522 = vld [vmem:[#allocation7 + $0xb80] sm:$0xff]
    %v523 = vld [vmem:[#allocation7 + $0xb88] sm:$0xff]
    %v524 = vld [vmem:[#allocation7 + $0xb90] sm:$0xff]
    %v525 = vld [vmem:[#allocation7 + $0xb98] sm:$0xff]
    %v526 = vld [vmem:[#allocation7 + $0xba0] sm:$0xff]
    %v527 = vld [vmem:[#allocation7 + $0xba8] sm:$0xff]
    %v528 = vld [vmem:[#allocation7 + $0xbb0] sm:$0xff]
    %v529 = vld [vmem:[#allocation7 + $0xbb8] sm:$0xff]
    %v530 = vld [vmem:[#allocation7 + $0xbc0] sm:$0xff]
    %v531 = vld [vmem:[#allocation7 + $0xbc8] sm:$0xff]
    %vm532 = vcmask 392192
    %v534 = vsel %vm532, %v121, 0
    %v537 = vsel %vm532, %v125, 0
    %v540 = vsel %vm532, %v129, 0
    %v543 = vsel %vm532, %v133, 0
    %v546 = vsel %vm532, %v137, 0
    %v549 = vsel %vm532, %v141, 0
    %v552 = vsel %vm532, %v145, 0
    %v555 = vsel %vm532, %v149, 0
    %v558 = vsel %vm532, %v153, 0
    %560 = vmatprep.subr.mxu0 %v155
    %561 = vmatpush1.msra.mxu0 %v154
    %562 = vmatprep.subr.mxu0 %v162
    %563 = vmatpush1.msra.mxu0 %v161
    %564 = vmatprep.subr.mxu0 %v169
    %565 = vmatpush1.msra.mxu0 %v168
    %566 = vmatprep.subr.mxu0 %v176
    %567 = vmatpush1.msra.mxu0 %v175
    %568 = vmatprep.subr.mxu0 %v183
    %569 = vmatpush1.msra.mxu0 %v182
    %570 = vmatprep.subr.mxu0 %v190
    %571 = vmatpush1.msra.mxu0 %v189
    %572 = vmatprep.subr.mxu0 %v197
    %573 = vmatpush1.msra.mxu0 %v196
    %574 = vmatprep.subr.mxu0 %v204
    %575 = vmatpush1.msra.mxu0 %v203
    %576 = vmatprep.subr.mxu0 %v211
    %577 = vmatpush1.msra.mxu0 %v210
    %578 = vmatprep.subr.mxu0 %v218
    %579 = vmatpush1.msra.mxu0 %v217
    %580 = vmatprep.subr.mxu0 %v225
    %581 = vmatpush1.msra.mxu0 %v224
    %582 = vmatprep.subr.mxu0 %v232
    %583 = vmatpush1.msra.mxu0 %v231
    %584 = vmatprep.subr.mxu0 %v239
    %585 = vmatpush1.msra.mxu0 %v238
    %586 = vmatprep.subr.mxu0 %v246
    %587 = vmatpush1.msra.mxu0 %v245
    %588 = vmatprep.subr.mxu0 %v253
    %589 = vmatpush1.msra.mxu0 %v252
    %590 = vmatprep.subr.mxu0 %v260
    %591 = vmatpush1.msra.mxu0 %v259
    %592 = vmatprep.subr.mxu0 %v267
    %593 = vmatpush1.msra.mxu0 %v266
    %594 = vmatprep.subr.mxu0 %v274
    %595 = vmatpush1.msra.mxu0 %v273
    %596 = vmatprep.subr.mxu0 %v281
    %597 = vmatpush1.msra.mxu0 %v280
    %598 = vmatprep.subr.mxu0 %v288
    %599 = vmatpush1.msra.mxu0 %v287
    %600 = vmatprep.subr.mxu0 %v295
    %601 = vmatpush1.msra.mxu0 %v294
    %602 = vmatprep.subr.mxu0 %v302
    %603 = vmatpush1.msra.mxu0 %v301
    %604 = vmatprep.subr.mxu0 %v309
    %605 = vmatpush1.msra.mxu0 %v308
    %606 = vmatprep.subr.mxu0 %v316
    %607 = vmatpush1.msra.mxu0 %v315
    %608 = vmatprep.subr.mxu0 %v323
    %609 = vmatpush1.msra.mxu0 %v322
    %610 = vmatprep.subr.mxu0 %v330
    %611 = vmatpush1.msra.mxu0 %v329
    %612 = vmatprep.subr.mxu0 %v337
    %613 = vmatpush1.msra.mxu0 %v336
    %614 = vmatprep.subr.mxu0 %v344
    %615 = vmatpush1.msra.mxu0 %v343
    %616 = vmatprep.subr.mxu0 %v351
    %617 = vmatpush1.msra.mxu0 %v350
    %618 = vmatprep.subr.mxu0 %v358
    %619 = vmatpush1.msra.mxu0 %v357
    %620 = vmatprep.subr.mxu0 %v365
    %621 = vmatpush1.msra.mxu0 %v364
    %622 = vmatprep.subr.mxu0 %v372
    %623 = vmatpush1.msra.mxu0 %v371
    %624 = vmatprep.mubr.f32.mxu0 %v119
    %625 = vmatmul.mubr.f32.gmra.mrb[0].mxu0 %v118
    %v626 = vpop.f32.mrb[0].mxu0
    %v627 = vadd.f32 0.0, %v626
    %v628 = vpop.f32.mrb[0].mxu0
    %v629 = vadd.f32 0.0, %v628
    %630 = vmatprep.mubr.f32.mxu0 %v123
    %631 = vmatmul.mubr.f32.gmra.mrb[0].mxu0 %v122
    %v632 = vpop.f32.mrb[0].mxu0
    %v633 = vadd.f32 0.0, %v632
    %v634 = vpop.f32.mrb[0].mxu0
    %v635 = vadd.f32 0.0, %v634
    %636 = vmatprep.mubr.f32.mxu0 %v127
    %637 = vmatmul.mubr.f32.gmra.mrb[0].mxu0 %v126
    %v638 = vpop.f32.mrb[0].mxu0
    %v639 = vadd.f32 0.0, %v638
    %v640 = vpop.f32.mrb[0].mxu0
    %v641 = vadd.f32 0.0, %v640
    %642 = vmatprep.mubr.f32.mxu0 %v131
    %643 = vmatmul.mubr.f32.gmra.mrb[0].mxu0 %v130
    %v644 = vpop.f32.mrb[0].mxu0
    %v645 = vadd.f32 0.0, %v644
    %v646 = vpop.f32.mrb[0].mxu0
    %v647 = vadd.f32 0.0, %v646
    %648 = vmatprep.mubr.f32.mxu0 %v135
    %649 = vmatmul.mubr.f32.gmra.mrb[0].mxu0 %v134
    %v650 = vpop.f32.mrb[0].mxu0
    %v651 = vadd.f32 0.0, %v650
    %v652 = vpop.f32.mrb[0].mxu0
    %v653 = vadd.f32 0.0, %v652
    %654 = vmatprep.mubr.f32.mxu0 %v139
    %655 = vmatmul.mubr.f32.gmra.mrb[0].mxu0 %v138
    %v656 = vpop.f32.mrb[0].mxu0
    %v657 = vadd.f32 0.0, %v656
    %v658 = vpop.f32.mrb[0].mxu0
    %v659 = vadd.f32 0.0, %v658
    %660 = vmatprep.mubr.f32.mxu0 %v143
    %661 = vmatmul.mubr.f32.gmra.mrb[0].mxu0 %v142
    %v662 = vpop.f32.mrb[0].mxu0
    %v663 = vadd.f32 0.0, %v662
    %v664 = vpop.f32.mrb[0].mxu0
    %v665 = vadd.f32 0.0, %v664
    %666 = vmatprep.mubr.f32.mxu0 %v147
    %667 = vmatmul.mubr.f32.gmra.mrb[0].mxu0 %v146
    %v668 = vpop.f32.mrb[0].mxu0
    %v669 = vadd.f32 0.0, %v668
    %v670 = vpop.f32.mrb[0].mxu0
    %v671 = vadd.f32 0.0, %v670
    %672 = vmatprep.mubr.f32.mxu0 %v151
    %673 = vmatmul.mubr.f32.gmra.mrb[0].mxu0 %v150
    %v674 = vpop.f32.mrb[0].mxu0
    %v675 = vadd.f32 0.0, %v674
    %v676 = vpop.f32.mrb[0].mxu0
    %v677 = vadd.f32 0.0, %v676
    %678 = vdwg.mxu0
    %679 = vmatprep.subr.mxu0 %v379
    %680 = vmatpush1.msra.mxu0 %v378
    %681 = vmatprep.subr.mxu0 %v386
    %682 = vmatpush1.msra.mxu0 %v385
    %683 = vmatprep.subr.mxu0 %v393
    %684 = vmatpush1.msra.mxu0 %v392
    %685 = vmatprep.subr.mxu0 %v400
    %686 = vmatpush1.msra.mxu0 %v399
    %687 = vmatprep.subr.mxu0 %v407
    %688 = vmatpush1.msra.mxu0 %v406
    %689 = vmatprep.subr.mxu0 %v414
    %690 = vmatpush1.msra.mxu0 %v413
    %691 = vmatprep.subr.mxu0 %v421
    %692 = vmatpush1.msra.mxu0 %v420
    %693 = vmatprep.subr.mxu0 %v428
    %694 = vmatpush1.msra.mxu0 %v427
    %695 = vmatprep.subr.mxu0 %v435
    %696 = vmatpush1.msra.mxu0 %v434
    %697 = vmatprep.subr.mxu0 %v442
    %698 = vmatpush1.msra.mxu0 %v441
    %699 = vmatprep.subr.mxu0 %v449
    %700 = vmatpush1.msra.mxu0 %v448
    %701 = vmatprep.subr.mxu0 %v456
    %702 = vmatpush1.msra.mxu0 %v455
    %703 = vmatprep.subr.mxu0 %v463
    %704 = vmatpush1.msra.mxu0 %v462
    %705 = vmatprep.subr.mxu0 %v470
    %706 = vmatpush1.msra.mxu0 %v469
    %707 = vmatprep.subr.mxu0 %v477
    %708 = vmatpush1.msra.mxu0 %v476
    %709 = vmatprep.subr.mxu0 %v484
    %710 = vmatpush1.msra.mxu0 %v483
    %711 = vmatprep.subr.mxu0 %v491
    %712 = vmatpush1.msra.mxu0 %v490
    %713 = vmatprep.subr.mxu0 %v498
    %714 = vmatpush1.msra.mxu0 %v497
    %715 = vmatprep.subr.mxu0 %v505
    %716 = vmatpush1.msra.mxu0 %v504
    %717 = vmatprep.subr.mxu0 %v512
    %718 = vmatpush1.msra.mxu0 %v511
    %719 = vmatprep.subr.mxu0 %v519
    %720 = vmatpush1.msra.mxu0 %v518
    %721 = vmatprep.subr.mxu0 %v526
    %722 = vmatpush1.msra.mxu0 %v525
    %723 = vmatprep.subr.mxu0 0.0
    %724 = vmatpush1.msra.mxu0 0.0
    %725 = vmatprep.subr.mxu0 0.0
    %726 = vmatpush1.msra.mxu0 0.0
    %727 = vmatprep.subr.mxu0 0.0
    %728 = vmatpush1.msra.mxu0 0.0
    %729 = vmatprep.subr.mxu0 0.0
    %730 = vmatpush1.msra.mxu0 0.0
    %731 = vmatprep.subr.mxu0 0.0
    %732 = vmatpush1.msra.mxu0 0.0
    %733 = vmatprep.subr.mxu0 0.0
    %734 = vmatpush1.msra.mxu0 0.0
    %735 = vmatprep.subr.mxu0 0.0
    %736 = vmatpush1.msra.mxu0 0.0
    %737 = vmatprep.subr.mxu0 0.0
    %738 = vmatpush1.msra.mxu0 0.0
    %739 = vmatprep.subr.mxu0 0.0
    %740 = vmatpush1.msra.mxu0 0.0
    %741 = vmatprep.subr.mxu0 0.0
    %742 = vmatpush1.msra.mxu0 0.0
    %743 = vmatprep.mubr.f32.mxu0 %v534
    %744 = vmatmul.mubr.f32.gmra.mrb[0].mxu0 %v120
    %v745 = vpop.f32.mrb[0].mxu0
    %v746 = vadd.f32 %v627, %v745
    %v747 = vpop.f32.mrb[0].mxu0
    %v748 = vadd.f32 %v629, %v747
    %749 = vmatprep.mubr.f32.mxu0 %v537
    %750 = vmatmul.mubr.f32.gmra.mrb[0].mxu0 %v124
    %v751 = vpop.f32.mrb[0].mxu0
    %v752 = vadd.f32 %v633, %v751
    %v753 = vpop.f32.mrb[0].mxu0
    %v754 = vadd.f32 %v635, %v753
    %755 = vmatprep.mubr.f32.mxu0 %v540
    %756 = vmatmul.mubr.f32.gmra.mrb[0].mxu0 %v128
    %v757 = vpop.f32.mrb[0].mxu0
    %v758 = vadd.f32 %v639, %v757
    %v759 = vpop.f32.mrb[0].mxu0
    %v760 = vadd.f32 %v641, %v759
    %761 = vmatprep.mubr.f32.mxu0 %v543
    %762 = vmatmul.mubr.f32.gmra.mrb[0].mxu0 %v132
    %v763 = vpop.f32.mrb[0].mxu0
    %v764 = vadd.f32 %v645, %v763
    %v765 = vpop.f32.mrb[0].mxu0
    %v766 = vadd.f32 %v647, %v765
    %767 = vmatprep.mubr.f32.mxu0 %v546
    %768 = vmatmul.mubr.f32.gmra.mrb[0].mxu0 %v136
    %v769 = vpop.f32.mrb[0].mxu0
    %v770 = vadd.f32 %v651, %v769
    %v771 = vpop.f32.mrb[0].mxu0
    %v772 = vadd.f32 %v653, %v771
    %773 = vmatprep.mubr.f32.mxu0 %v549
    %774 = vmatmul.mubr.f32.gmra.mrb[0].mxu0 %v140
    %v775 = vpop.f32.mrb[0].mxu0
    %v776 = vadd.f32 %v657, %v775
    %v777 = vpop.f32.mrb[0].mxu0
    %v778 = vadd.f32 %v659, %v777
    %779 = vmatprep.mubr.f32.mxu0 %v552
    %780 = vmatmul.mubr.f32.gmra.mrb[0].mxu0 %v144
    %v781 = vpop.f32.mrb[0].mxu0
    %v782 = vadd.f32 %v663, %v781
    %v783 = vpop.f32.mrb[0].mxu0
    %v784 = vadd.f32 %v665, %v783
    %785 = vmatprep.mubr.f32.mxu0 %v555
    %786 = vmatmul.mubr.f32.gmra.mrb[0].mxu0 %v148
    %v787 = vpop.f32.mrb[0].mxu0
    %v788 = vadd.f32 %v669, %v787
    %v789 = vpop.f32.mrb[0].mxu0
    %v790 = vadd.f32 %v671, %v789
    %791 = vmatprep.mubr.f32.mxu0 %v558
    %792 = vmatmul.mubr.f32.gmra.mrb[0].mxu0 %v152
    %v793 = vpop.f32.mrb[0].mxu0
    %v794 = vadd.f32 %v675, %v793
    %v795 = vpop.f32.mrb[0].mxu0
    %v796 = vadd.f32 %v677, %v795
    %797 = vdwg.mxu0
    %798 = vmatprep.subr.mxu0 %v157
    %799 = vmatpush1.msra.mxu0 %v156
    %800 = vmatprep.subr.mxu0 %v164
    %801 = vmatpush1.msra.mxu0 %v163
    %802 = vmatprep.subr.mxu0 %v171
    %803 = vmatpush1.msra.mxu0 %v170
    %804 = vmatprep.subr.mxu0 %v178
    %805 = vmatpush1.msra.mxu0 %v177
    %806 = vmatprep.subr.mxu0 %v185
    %807 = vmatpush1.msra.mxu0 %v184
    %808 = vmatprep.subr.mxu0 %v192
    %809 = vmatpush1.msra.mxu0 %v191
    %810 = vmatprep.subr.mxu0 %v199
    %811 = vmatpush1.msra.mxu0 %v198
    %812 = vmatprep.subr.mxu0 %v206
    %813 = vmatpush1.msra.mxu0 %v205
    %814 = vmatprep.subr.mxu0 %v213
    %815 = vmatpush1.msra.mxu0 %v212
    %816 = vmatprep.subr.mxu0 %v220
    %817 = vmatpush1.msra.mxu0 %v219
    %818 = vmatprep.subr.mxu0 %v227
    %819 = vmatpush1.msra.mxu0 %v226
    %820 = vmatprep.subr.mxu0 %v234
    %821 = vmatpush1.msra.mxu0 %v233
    %822 = vmatprep.subr.mxu0 %v241
    %823 = vmatpush1.msra.mxu0 %v240
    %824 = vmatprep.subr.mxu0 %v248
    %825 = vmatpush1.msra.mxu0 %v247
    %826 = vmatprep.subr.mxu0 %v255
    %827 = vmatpush1.msra.mxu0 %v254
    %828 = vmatprep.subr.mxu0 %v262
    %829 = vmatpush1.msra.mxu0 %v261
    %830 = vmatprep.subr.mxu0 %v269
    %831 = vmatpush1.msra.mxu0 %v268
    %832 = vmatprep.subr.mxu0 %v276
    %833 = vmatpush1.msra.mxu0 %v275
    %834 = vmatprep.subr.mxu0 %v283
    %835 = vmatpush1.msra.mxu0 %v282
    %836 = vmatprep.subr.mxu0 %v290
    %837 = vmatpush1.msra.mxu0 %v289
    %838 = vmatprep.subr.mxu0 %v297
    %839 = vmatpush1.msra.mxu0 %v296
    %840 = vmatprep.subr.mxu0 %v304
    %841 = vmatpush1.msra.mxu0 %v303
    %842 = vmatprep.subr.mxu0 %v311
    %843 = vmatpush1.msra.mxu0 %v310
    %844 = vmatprep.subr.mxu0 %v318
    %845 = vmatpush1.msra.mxu0 %v317
    %846 = vmatprep.subr.mxu0 %v325
    %847 = vmatpush1.msra.mxu0 %v324
    %848 = vmatprep.subr.mxu0 %v332
    %849 = vmatpush1.msra.mxu0 %v331
    %850 = vmatprep.subr.mxu0 %v339
    %851 = vmatpush1.msra.mxu0 %v338
    %852 = vmatprep.subr.mxu0 %v346
    %853 = vmatpush1.msra.mxu0 %v345
    %854 = vmatprep.subr.mxu0 %v353
    %855 = vmatpush1.msra.mxu0 %v352
    %856 = vmatprep.subr.mxu0 %v360
    %857 = vmatpush1.msra.mxu0 %v359
    %858 = vmatprep.subr.mxu0 %v367
    %859 = vmatpush1.msra.mxu0 %v366
    %860 = vmatprep.subr.mxu0 %v374
    %861 = vmatpush1.msra.mxu0 %v373
    %862 = vmatprep.mubr.f32.mxu0 %v119
    %863 = vmatmul.mubr.f32.gmra.mrb[0].mxu0 %v118
    %v864 = vpop.f32.mrb[0].mxu0
    %v865 = vadd.f32 0.0, %v864
    %v866 = vpop.f32.mrb[0].mxu0
    %v867 = vadd.f32 0.0, %v866
    %868 = vmatprep.mubr.f32.mxu0 %v123
    %869 = vmatmul.mubr.f32.gmra.mrb[0].mxu0 %v122
    %v870 = vpop.f32.mrb[0].mxu0
    %v871 = vadd.f32 0.0, %v870
    %v872 = vpop.f32.mrb[0].mxu0
    %v873 = vadd.f32 0.0, %v872
    %874 = vmatprep.mubr.f32.mxu0 %v127
    %875 = vmatmul.mubr.f32.gmra.mrb[0].mxu0 %v126
    %v876 = vpop.f32.mrb[0].mxu0
    %v877 = vadd.f32 0.0, %v876
    %v878 = vpop.f32.mrb[0].mxu0
    %v879 = vadd.f32 0.0, %v878
    %880 = vmatprep.mubr.f32.mxu0 %v131
    %881 = vmatmul.mubr.f32.gmra.mrb[0].mxu0 %v130
    %v882 = vpop.f32.mrb[0].mxu0
    %v883 = vadd.f32 0.0, %v882
    %v884 = vpop.f32.mrb[0].mxu0
    %v885 = vadd.f32 0.0, %v884
    %886 = vmatprep.mubr.f32.mxu0 %v135
    %887 = vmatmul.mubr.f32.gmra.mrb[0].mxu0 %v134
    %v888 = vpop.f32.mrb[0].mxu0
    %v889 = vadd.f32 0.0, %v888
    %v890 = vpop.f32.mrb[0].mxu0
    %v891 = vadd.f32 0.0, %v890
    %892 = vmatprep.mubr.f32.mxu0 %v139
    %893 = vmatmul.mubr.f32.gmra.mrb[0].mxu0 %v138
    %v894 = vpop.f32.mrb[0].mxu0
    %v895 = vadd.f32 0.0, %v894
    %v896 = vpop.f32.mrb[0].mxu0
    %v897 = vadd.f32 0.0, %v896
    %898 = vmatprep.mubr.f32.mxu0 %v143
    %899 = vmatmul.mubr.f32.gmra.mrb[0].mxu0 %v142
    %v900 = vpop.f32.mrb[0].mxu0
    %v901 = vadd.f32 0.0, %v900
    %v902 = vpop.f32.mrb[0].mxu0
    %v903 = vadd.f32 0.0, %v902
    %904 = vmatprep.mubr.f32.mxu0 %v147
    %905 = vmatmul.mubr.f32.gmra.mrb[0].mxu0 %v146
    %v906 = vpop.f32.mrb[0].mxu0
    %v907 = vadd.f32 0.0, %v906
    %v908 = vpop.f32.mrb[0].mxu0
    %v909 = vadd.f32 0.0, %v908
    %910 = vmatprep.mubr.f32.mxu0 %v151
    %911 = vmatmul.mubr.f32.gmra.mrb[0].mxu0 %v150
    %v912 = vpop.f32.mrb[0].mxu0
    %v913 = vadd.f32 0.0, %v912
    %v914 = vpop.f32.mrb[0].mxu0
    %v915 = vadd.f32 0.0, %v914
    %916 = vdwg.mxu0
    %917 = vmatprep.subr.mxu0 %v381
    %918 = vmatpush1.msra.mxu0 %v380
    %919 = vmatprep.subr.mxu0 %v388
    %920 = vmatpush1.msra.mxu0 %v387
    %921 = vmatprep.subr.mxu0 %v395
    %922 = vmatpush1.msra.mxu0 %v394
    %923 = vmatprep.subr.mxu0 %v402
    %924 = vmatpush1.msra.mxu0 %v401
    %925 = vmatprep.subr.mxu0 %v409
    %926 = vmatpush1.msra.mxu0 %v408
    %927 = vmatprep.subr.mxu0 %v416
    %928 = vmatpush1.msra.mxu0 %v415
    %929 = vmatprep.subr.mxu0 %v423
    %930 = vmatpush1.msra.mxu0 %v422
    %931 = vmatprep.subr.mxu0 %v430
    %932 = vmatpush1.msra.mxu0 %v429
    %933 = vmatprep.subr.mxu0 %v437
    %934 = vmatpush1.msra.mxu0 %v436
    %935 = vmatprep.subr.mxu0 %v444
    %936 = vmatpush1.msra.mxu0 %v443
    %937 = vmatprep.subr.mxu0 %v451
    %938 = vmatpush1.msra.mxu0 %v450
    %939 = vmatprep.subr.mxu0 %v458
    %940 = vmatpush1.msra.mxu0 %v457
    %941 = vmatprep.subr.mxu0 %v465
    %942 = vmatpush1.msra.mxu0 %v464
    %943 = vmatprep.subr.mxu0 %v472
    %944 = vmatpush1.msra.mxu0 %v471
    %945 = vmatprep.subr.mxu0 %v479
    %946 = vmatpush1.msra.mxu0 %v478
    %947 = vmatprep.subr.mxu0 %v486
    %948 = vmatpush1.msra.mxu0 %v485
    %949 = vmatprep.subr.mxu0 %v493
    %950 = vmatpush1.msra.mxu0 %v492
    %951 = vmatprep.subr.mxu0 %v500
    %952 = vmatpush1.msra.mxu0 %v499
    %953 = vmatprep.subr.mxu0 %v507
    %954 = vmatpush1.msra.mxu0 %v506
    %955 = vmatprep.subr.mxu0 %v514
    %956 = vmatpush1.msra.mxu0 %v513
    %957 = vmatprep.subr.mxu0 %v521
    %958 = vmatpush1.msra.mxu0 %v520
    %959 = vmatprep.subr.mxu0 %v528
    %960 = vmatpush1.msra.mxu0 %v527
    %961 = vmatprep.subr.mxu0 0.0
    %962 = vmatpush1.msra.mxu0 0.0
    %963 = vmatprep.subr.mxu0 0.0
    %964 = vmatpush1.msra.mxu0 0.0
    %965 = vmatprep.subr.mxu0 0.0
    %966 = vmatpush1.msra.mxu0 0.0
    %967 = vmatprep.subr.mxu0 0.0
    %968 = vmatpush1.msra.mxu0 0.0
    %969 = vmatprep.subr.mxu0 0.0
    %970 = vmatpush1.msra.mxu0 0.0
    %971 = vmatprep.subr.mxu0 0.0
    %972 = vmatpush1.msra.mxu0 0.0
    %973 = vmatprep.subr.mxu0 0.0
    %974 = vmatpush1.msra.mxu0 0.0
    %975 = vmatprep.subr.mxu0 0.0
    %976 = vmatpush1.msra.mxu0 0.0
    %977 = vmatprep.subr.mxu0 0.0
    %978 = vmatpush1.msra.mxu0 0.0
    %979 = vmatprep.subr.mxu0 0.0
    %980 = vmatpush1.msra.mxu0 0.0
    %981 = vmatprep.mubr.f32.mxu0 %v534
    %982 = vmatmul.mubr.f32.gmra.mrb[0].mxu0 %v120
    %v983 = vpop.f32.mrb[0].mxu0
    %v984 = vadd.f32 %v865, %v983
    %v985 = vpop.f32.mrb[0].mxu0
    %v986 = vadd.f32 %v867, %v985
    %987 = vmatprep.mubr.f32.mxu0 %v537
    %988 = vmatmul.mubr.f32.gmra.mrb[0].mxu0 %v124
    %v989 = vpop.f32.mrb[0].mxu0
    %v990 = vadd.f32 %v871, %v989
    %v991 = vpop.f32.mrb[0].mxu0
    %v992 = vadd.f32 %v873, %v991
    %993 = vmatprep.mubr.f32.mxu0 %v540
    %994 = vmatmul.mubr.f32.gmra.mrb[0].mxu0 %v128
    %v995 = vpop.f32.mrb[0].mxu0
    %v996 = vadd.f32 %v877, %v995
    %v997 = vpop.f32.mrb[0].mxu0
    %v998 = vadd.f32 %v879, %v997
    %999 = vmatprep.mubr.f32.mxu0 %v543
    %1000 = vmatmul.mubr.f32.gmra.mrb[0].mxu0 %v132
    %v1001 = vpop.f32.mrb[0].mxu0
    %v1002 = vadd.f32 %v883, %v1001
    %v1003 = vpop.f32.mrb[0].mxu0
    %v1004 = vadd.f32 %v885, %v1003
    %1005 = vmatprep.mubr.f32.mxu0 %v546
    %1006 = vmatmul.mubr.f32.gmra.mrb[0].mxu0 %v136
    %v1007 = vpop.f32.mrb[0].mxu0
    %v1008 = vadd.f32 %v889, %v1007
    %v1009 = vpop.f32.mrb[0].mxu0
    %v1010 = vadd.f32 %v891, %v1009
    %1011 = vmatprep.mubr.f32.mxu0 %v549
    %1012 = vmatmul.mubr.f32.gmra.mrb[0].mxu0 %v140
    %v1013 = vpop.f32.mrb[0].mxu0
    %v1014 = vadd.f32 %v895, %v1013
    %v1015 = vpop.f32.mrb[0].mxu0
    %v1016 = vadd.f32 %v897, %v1015
    %1017 = vmatprep.mubr.f32.mxu0 %v552
    %1018 = vmatmul.mubr.f32.gmra.mrb[0].mxu0 %v144
    %v1019 = vpop.f32.mrb[0].mxu0
    %v1020 = vadd.f32 %v901, %v1019
    %v1021 = vpop.f32.mrb[0].mxu0
    %v1022 = vadd.f32 %v903, %v1021
    %1023 = vmatprep.mubr.f32.mxu0 %v555
    %1024 = vmatmul.mubr.f32.gmra.mrb[0].mxu0 %v148
    %v1025 = vpop.f32.mrb[0].mxu0
    %v1026 = vadd.f32 %v907, %v1025
    %v1027 = vpop.f32.mrb[0].mxu0
    %v1028 = vadd.f32 %v909, %v1027
    %1029 = vmatprep.mubr.f32.mxu0 %v558
    %1030 = vmatmul.mubr.f32.gmra.mrb[0].mxu0 %v152
    %v1031 = vpop.f32.mrb[0].mxu0
    %v1032 = vadd.f32 %v913, %v1031
    %v1033 = vpop.f32.mrb[0].mxu0
    %v1034 = vadd.f32 %v915, %v1033
    %1035 = vdwg.mxu0
    %1036 = vmatprep.subr.mxu0 %v159
    %1037 = vmatpush1.msra.mxu0 %v158
    %1038 = vmatprep.subr.mxu0 %v166
    %1039 = vmatpush1.msra.mxu0 %v165
    %1040 = vmatprep.subr.mxu0 %v173
    %1041 = vmatpush1.msra.mxu0 %v172
    %1042 = vmatprep.subr.mxu0 %v180
    %1043 = vmatpush1.msra.mxu0 %v179
    %1044 = vmatprep.subr.mxu0 %v187
    %1045 = vmatpush1.msra.mxu0 %v186
    %1046 = vmatprep.subr.mxu0 %v194
    %1047 = vmatpush1.msra.mxu0 %v193
    %1048 = vmatprep.subr.mxu0 %v201
    %1049 = vmatpush1.msra.mxu0 %v200
    %1050 = vmatprep.subr.mxu0 %v208
    %1051 = vmatpush1.msra.mxu0 %v207
    %1052 = vmatprep.subr.mxu0 %v215
    %1053 = vmatpush1.msra.mxu0 %v214
    %1054 = vmatprep.subr.mxu0 %v222
    %1055 = vmatpush1.msra.mxu0 %v221
    %1056 = vmatprep.subr.mxu0 %v229
    %1057 = vmatpush1.msra.mxu0 %v228
    %1058 = vmatprep.subr.mxu0 %v236
    %1059 = vmatpush1.msra.mxu0 %v235
    %1060 = vmatprep.subr.mxu0 %v243
    %1061 = vmatpush1.msra.mxu0 %v242
    %1062 = vmatprep.subr.mxu0 %v250
    %1063 = vmatpush1.msra.mxu0 %v249
    %1064 = vmatprep.subr.mxu0 %v257
    %1065 = vmatpush1.msra.mxu0 %v256
    %1066 = vmatprep.subr.mxu0 %v264
    %1067 = vmatpush1.msra.mxu0 %v263
    %1068 = vmatprep.subr.mxu0 %v271
    %1069 = vmatpush1.msra.mxu0 %v270
    %1070 = vmatprep.subr.mxu0 %v278
    %1071 = vmatpush1.msra.mxu0 %v277
    %1072 = vmatprep.subr.mxu0 %v285
    %1073 = vmatpush1.msra.mxu0 %v284
    %1074 = vmatprep.subr.mxu0 %v292
    %1075 = vmatpush1.msra.mxu0 %v291
    %1076 = vmatprep.subr.mxu0 %v299
    %1077 = vmatpush1.msra.mxu0 %v298
    %1078 = vmatprep.subr.mxu0 %v306
    %1079 = vmatpush1.msra.mxu0 %v305
    %1080 = vmatprep.subr.mxu0 %v313
    %1081 = vmatpush1.msra.mxu0 %v312
    %1082 = vmatprep.subr.mxu0 %v320
    %1083 = vmatpush1.msra.mxu0 %v319
    %1084 = vmatprep.subr.mxu0 %v327
    %1085 = vmatpush1.msra.mxu0 %v326
    %1086 = vmatprep.subr.mxu0 %v334
    %1087 = vmatpush1.msra.mxu0 %v333
    %1088 = vmatprep.subr.mxu0 %v341
    %1089 = vmatpush1.msra.mxu0 %v340
    %1090 = vmatprep.subr.mxu0 %v348
    %1091 = vmatpush1.msra.mxu0 %v347
    %1092 = vmatprep.subr.mxu0 %v355
    %1093 = vmatpush1.msra.mxu0 %v354
    %1094 = vmatprep.subr.mxu0 %v362
    %1095 = vmatpush1.msra.mxu0 %v361
    %1096 = vmatprep.subr.mxu0 %v369
    %1097 = vmatpush1.msra.mxu0 %v368
    %1098 = vmatprep.subr.mxu0 %v376
    %1099 = vmatpush1.msra.mxu0 %v375
    %1100 = vmatprep.mubr.f32.mxu0 %v119
    %1101 = vmatmul.mubr.f32.gmra.mrb[0].mxu0 %v118
    %v1102 = vpop.f32.mrb[0].mxu0
    %v1103 = vadd.f32 0.0, %v1102
    %v1104 = vpop.f32.mrb[0].mxu0
    %v1105 = vadd.f32 0.0, %v1104
    %1106 = vmatprep.mubr.f32.mxu0 %v123
    %1107 = vmatmul.mubr.f32.gmra.mrb[0].mxu0 %v122
    %v1108 = vpop.f32.mrb[0].mxu0
    %v1109 = vadd.f32 0.0, %v1108
    %v1110 = vpop.f32.mrb[0].mxu0
    %v1111 = vadd.f32 0.0, %v1110
    %1112 = vmatprep.mubr.f32.mxu0 %v127
    %1113 = vmatmul.mubr.f32.gmra.mrb[0].mxu0 %v126
    %v1114 = vpop.f32.mrb[0].mxu0
    %v1115 = vadd.f32 0.0, %v1114
    %v1116 = vpop.f32.mrb[0].mxu0
    %v1117 = vadd.f32 0.0, %v1116
    %1118 = vmatprep.mubr.f32.mxu0 %v131
    %1119 = vmatmul.mubr.f32.gmra.mrb[0].mxu0 %v130
    %v1120 = vpop.f32.mrb[0].mxu0
    %v1121 = vadd.f32 0.0, %v1120
    %v1122 = vpop.f32.mrb[0].mxu0
    %v1123 = vadd.f32 0.0, %v1122
    %1124 = vmatprep.mubr.f32.mxu0 %v135
    %1125 = vmatmul.mubr.f32.gmra.mrb[0].mxu0 %v134
    %v1126 = vpop.f32.mrb[0].mxu0
    %v1127 = vadd.f32 0.0, %v1126
    %v1128 = vpop.f32.mrb[0].mxu0
    %v1129 = vadd.f32 0.0, %v1128
    %1130 = vmatprep.mubr.f32.mxu0 %v139
    %1131 = vmatmul.mubr.f32.gmra.mrb[0].mxu0 %v138
    %v1132 = vpop.f32.mrb[0].mxu0
    %v1133 = vadd.f32 0.0, %v1132
    %v1134 = vpop.f32.mrb[0].mxu0
    %v1135 = vadd.f32 0.0, %v1134
    %1136 = vmatprep.mubr.f32.mxu0 %v143
    %1137 = vmatmul.mubr.f32.gmra.mrb[0].mxu0 %v142
    %v1138 = vpop.f32.mrb[0].mxu0
    %v1139 = vadd.f32 0.0, %v1138
    %v1140 = vpop.f32.mrb[0].mxu0
    %v1141 = vadd.f32 0.0, %v1140
    %1142 = vmatprep.mubr.f32.mxu0 %v147
    %1143 = vmatmul.mubr.f32.gmra.mrb[0].mxu0 %v146
    %v1144 = vpop.f32.mrb[0].mxu0
    %v1145 = vadd.f32 0.0, %v1144
    %v1146 = vpop.f32.mrb[0].mxu0
    %v1147 = vadd.f32 0.0, %v1146
    %1148 = vmatprep.mubr.f32.mxu0 %v151
    %1149 = vmatmul.mubr.f32.gmra.mrb[0].mxu0 %v150
    %v1150 = vpop.f32.mrb[0].mxu0
    %v1151 = vadd.f32 0.0, %v1150
    %v1152 = vpop.f32.mrb[0].mxu0
    %v1153 = vadd.f32 0.0, %v1152
    %1154 = vdwg.mxu0
    %1155 = vmatprep.subr.mxu0 %v383
    %1156 = vmatpush1.msra.mxu0 %v382
    %1157 = vmatprep.subr.mxu0 %v390
    %1158 = vmatpush1.msra.mxu0 %v389
    %1159 = vmatprep.subr.mxu0 %v397
    %1160 = vmatpush1.msra.mxu0 %v396
    %1161 = vmatprep.subr.mxu0 %v404
    %1162 = vmatpush1.msra.mxu0 %v403
    %1163 = vmatprep.subr.mxu0 %v411
    %1164 = vmatpush1.msra.mxu0 %v410
    %1165 = vmatprep.subr.mxu0 %v418
    %1166 = vmatpush1.msra.mxu0 %v417
    %1167 = vmatprep.subr.mxu0 %v425
    %1168 = vmatpush1.msra.mxu0 %v424
    %1169 = vmatprep.subr.mxu0 %v432
    %1170 = vmatpush1.msra.mxu0 %v431
    %1171 = vmatprep.subr.mxu0 %v439
    %1172 = vmatpush1.msra.mxu0 %v438
    %1173 = vmatprep.subr.mxu0 %v446
    %1174 = vmatpush1.msra.mxu0 %v445
    %1175 = vmatprep.subr.mxu0 %v453
    %1176 = vmatpush1.msra.mxu0 %v452
    %1177 = vmatprep.subr.mxu0 %v460
    %1178 = vmatpush1.msra.mxu0 %v459
    %1179 = vmatprep.subr.mxu0 %v467
    %1180 = vmatpush1.msra.mxu0 %v466
    %1181 = vmatprep.subr.mxu0 %v474
    %1182 = vmatpush1.msra.mxu0 %v473
    %1183 = vmatprep.subr.mxu0 %v481
    %1184 = vmatpush1.msra.mxu0 %v480
    %1185 = vmatprep.subr.mxu0 %v488
    %1186 = vmatpush1.msra.mxu0 %v487
    %1187 = vmatprep.subr.mxu0 %v495
    %1188 = vmatpush1.msra.mxu0 %v494
    %1189 = vmatprep.subr.mxu0 %v502
    %1190 = vmatpush1.msra.mxu0 %v501
    %1191 = vmatprep.subr.mxu0 %v509
    %1192 = vmatpush1.msra.mxu0 %v508
    %1193 = vmatprep.subr.mxu0 %v516
    %1194 = vmatpush1.msra.mxu0 %v515
    %1195 = vmatprep.subr.mxu0 %v523
    %1196 = vmatpush1.msra.mxu0 %v522
    %1197 = vmatprep.subr.mxu0 %v530
    %1198 = vmatpush1.msra.mxu0 %v529
    %1199 = vmatprep.subr.mxu0 0.0
    %1200 = vmatpush1.msra.mxu0 0.0
    %1201 = vmatprep.subr.mxu0 0.0
    %1202 = vmatpush1.msra.mxu0 0.0
    %1203 = vmatprep.subr.mxu0 0.0
    %1204 = vmatpush1.msra.mxu0 0.0
    %1205 = vmatprep.subr.mxu0 0.0
    %1206 = vmatpush1.msra.mxu0 0.0
    %1207 = vmatprep.subr.mxu0 0.0
    %1208 = vmatpush1.msra.mxu0 0.0
    %1209 = vmatprep.subr.mxu0 0.0
    %1210 = vmatpush1.msra.mxu0 0.0
    %1211 = vmatprep.subr.mxu0 0.0
    %1212 = vmatpush1.msra.mxu0 0.0
    %1213 = vmatprep.subr.mxu0 0.0
    %1214 = vmatpush1.msra.mxu0 0.0
    %1215 = vmatprep.subr.mxu0 0.0
    %1216 = vmatpush1.msra.mxu0 0.0
    %1217 = vmatprep.subr.mxu0 0.0
    %1218 = vmatpush1.msra.mxu0 0.0
    %1219 = vmatprep.mubr.f32.mxu0 %v534
    %1220 = vmatmul.mubr.f32.gmra.mrb[0].mxu0 %v120
    %v1221 = vpop.f32.mrb[0].mxu0
    %v1222 = vadd.f32 %v1103, %v1221
    %v1223 = vpop.f32.mrb[0].mxu0
    %v1224 = vadd.f32 %v1105, %v1223
    %1225 = vmatprep.mubr.f32.mxu0 %v537
    %1226 = vmatmul.mubr.f32.gmra.mrb[0].mxu0 %v124
    %v1227 = vpop.f32.mrb[0].mxu0
    %v1228 = vadd.f32 %v1109, %v1227
    %v1229 = vpop.f32.mrb[0].mxu0
    %v1230 = vadd.f32 %v1111, %v1229
    %1231 = vmatprep.mubr.f32.mxu0 %v540
    %1232 = vmatmul.mubr.f32.gmra.mrb[0].mxu0 %v128
    %v1233 = vpop.f32.mrb[0].mxu0
    %v1234 = vadd.f32 %v1115, %v1233
    %v1235 = vpop.f32.mrb[0].mxu0
    %v1236 = vadd.f32 %v1117, %v1235
    %1237 = vmatprep.mubr.f32.mxu0 %v543
    %1238 = vmatmul.mubr.f32.gmra.mrb[0].mxu0 %v132
    %v1239 = vpop.f32.mrb[0].mxu0
    %v1240 = vadd.f32 %v1121, %v1239
    %v1241 = vpop.f32.mrb[0].mxu0
    %v1242 = vadd.f32 %v1123, %v1241
    %1243 = vmatprep.mubr.f32.mxu0 %v546
    %1244 = vmatmul.mubr.f32.gmra.mrb[0].mxu0 %v136
    %v1245 = vpop.f32.mrb[0].mxu0
    %v1246 = vadd.f32 %v1127, %v1245
    %v1247 = vpop.f32.mrb[0].mxu0
    %v1248 = vadd.f32 %v1129, %v1247
    %1249 = vmatprep.mubr.f32.mxu0 %v549
    %1250 = vmatmul.mubr.f32.gmra.mrb[0].mxu0 %v140
    %v1251 = vpop.f32.mrb[0].mxu0
    %v1252 = vadd.f32 %v1133, %v1251
    %v1253 = vpop.f32.mrb[0].mxu0
    %v1254 = vadd.f32 %v1135, %v1253
    %1255 = vmatprep.mubr.f32.mxu0 %v552
    %1256 = vmatmul.mubr.f32.gmra.mrb[0].mxu0 %v144
    %v1257 = vpop.f32.mrb[0].mxu0
    %v1258 = vadd.f32 %v1139, %v1257
    %v1259 = vpop.f32.mrb[0].mxu0
    %v1260 = vadd.f32 %v1141, %v1259
    %1261 = vmatprep.mubr.f32.mxu0 %v555
    %1262 = vmatmul.mubr.f32.gmra.mrb[0].mxu0 %v148
    %v1263 = vpop.f32.mrb[0].mxu0
    %v1264 = vadd.f32 %v1145, %v1263
    %v1265 = vpop.f32.mrb[0].mxu0
    %v1266 = vadd.f32 %v1147, %v1265
    %1267 = vmatprep.mubr.f32.mxu0 %v558
    %1268 = vmatmul.mubr.f32.gmra.mrb[0].mxu0 %v152
    %v1269 = vpop.f32.mrb[0].mxu0
    %v1270 = vadd.f32 %v1151, %v1269
    %v1271 = vpop.f32.mrb[0].mxu0
    %v1272 = vadd.f32 %v1153, %v1271
    %1273 = vdwg.mxu0
    %1274 = vmatprep.subr.mxu0 0.0
    %1275 = vmatpush1.msra.mxu0 %v160
    %1276 = vmatprep.subr.mxu0 0.0
    %1277 = vmatpush1.msra.mxu0 %v167
    %1278 = vmatprep.subr.mxu0 0.0
    %1279 = vmatpush1.msra.mxu0 %v174
    %1280 = vmatprep.subr.mxu0 0.0
    %1281 = vmatpush1.msra.mxu0 %v181
    %1282 = vmatprep.subr.mxu0 0.0
    %1283 = vmatpush1.msra.mxu0 %v188
    %1284 = vmatprep.subr.mxu0 0.0
    %1285 = vmatpush1.msra.mxu0 %v195
    %1286 = vmatprep.subr.mxu0 0.0
    %1287 = vmatpush1.msra.mxu0 %v202
    %1288 = vmatprep.subr.mxu0 0.0
    %1289 = vmatpush1.msra.mxu0 %v209
    %1290 = vmatprep.subr.mxu0 0.0
    %1291 = vmatpush1.msra.mxu0 %v216
    %1292 = vmatprep.subr.mxu0 0.0
    %1293 = vmatpush1.msra.mxu0 %v223
    %1294 = vmatprep.subr.mxu0 0.0
    %1295 = vmatpush1.msra.mxu0 %v230
    %1296 = vmatprep.subr.mxu0 0.0
    %1297 = vmatpush1.msra.mxu0 %v237
    %1298 = vmatprep.subr.mxu0 0.0
    %1299 = vmatpush1.msra.mxu0 %v244
    %1300 = vmatprep.subr.mxu0 0.0
    %1301 = vmatpush1.msra.mxu0 %v251
    %1302 = vmatprep.subr.mxu0 0.0
    %1303 = vmatpush1.msra.mxu0 %v258
    %1304 = vmatprep.subr.mxu0 0.0
    %1305 = vmatpush1.msra.mxu0 %v265
    %1306 = vmatprep.subr.mxu0 0.0
    %1307 = vmatpush1.msra.mxu0 %v272
    %1308 = vmatprep.subr.mxu0 0.0
    %1309 = vmatpush1.msra.mxu0 %v279
    %1310 = vmatprep.subr.mxu0 0.0
    %1311 = vmatpush1.msra.mxu0 %v286
    %1312 = vmatprep.subr.mxu0 0.0
    %1313 = vmatpush1.msra.mxu0 %v293
    %1314 = vmatprep.subr.mxu0 0.0
    %1315 = vmatpush1.msra.mxu0 %v300
    %1316 = vmatprep.subr.mxu0 0.0
    %1317 = vmatpush1.msra.mxu0 %v307
    %1318 = vmatprep.subr.mxu0 0.0
    %1319 = vmatpush1.msra.mxu0 %v314
    %1320 = vmatprep.subr.mxu0 0.0
    %1321 = vmatpush1.msra.mxu0 %v321
    %1322 = vmatprep.subr.mxu0 0.0
    %1323 = vmatpush1.msra.mxu0 %v328
    %1324 = vmatprep.subr.mxu0 0.0
    %1325 = vmatpush1.msra.mxu0 %v335
    %1326 = vmatprep.subr.mxu0 0.0
    %1327 = vmatpush1.msra.mxu0 %v342
    %1328 = vmatprep.subr.mxu0 0.0
    %1329 = vmatpush1.msra.mxu0 %v349
    %1330 = vmatprep.subr.mxu0 0.0
    %1331 = vmatpush1.msra.mxu0 %v356
    %1332 = vmatprep.subr.mxu0 0.0
    %1333 = vmatpush1.msra.mxu0 %v363
    %1334 = vmatprep.subr.mxu0 0.0
    %1335 = vmatpush1.msra.mxu0 %v370
    %1336 = vmatprep.subr.mxu0 0.0
    %1337 = vmatpush1.msra.mxu0 %v377
    %1338 = vmatprep.mubr.f32.mxu0 %v119
    %1339 = vmatmul.mubr.f32.gmra.mrb[0].mxu0 %v118
    %v1340 = vpop.f32.mrb[0].mxu0
    %v1341 = vadd.f32 0.0, %v1340
    %v1342 = vpop.f32.mrb[0].mxu0
    %1343 = vmatprep.mubr.f32.mxu0 %v123
    %1344 = vmatmul.mubr.f32.gmra.mrb[0].mxu0 %v122
    %v1345 = vpop.f32.mrb[0].mxu0
    %v1346 = vadd.f32 0.0, %v1345
    %v1347 = vpop.f32.mrb[0].mxu0
    %1348 = vmatprep.mubr.f32.mxu0 %v127
    %1349 = vmatmul.mubr.f32.gmra.mrb[0].mxu0 %v126
    %v1350 = vpop.f32.mrb[0].mxu0
    %v1351 = vadd.f32 0.0, %v1350
    %v1352 = vpop.f32.mrb[0].mxu0
    %1353 = vmatprep.mubr.f32.mxu0 %v131
    %1354 = vmatmul.mubr.f32.gmra.mrb[0].mxu0 %v130
    %v1355 = vpop.f32.mrb[0].mxu0
    %v1356 = vadd.f32 0.0, %v1355
    %v1357 = vpop.f32.mrb[0].mxu0
    %1358 = vmatprep.mubr.f32.mxu0 %v135
    %1359 = vmatmul.mubr.f32.gmra.mrb[0].mxu0 %v134
    %v1360 = vpop.f32.mrb[0].mxu0
    %v1361 = vadd.f32 0.0, %v1360
    %v1362 = vpop.f32.mrb[0].mxu0
    %1363 = vmatprep.mubr.f32.mxu0 %v139
    %1364 = vmatmul.mubr.f32.gmra.mrb[0].mxu0 %v138
    %v1365 = vpop.f32.mrb[0].mxu0
    %v1366 = vadd.f32 0.0, %v1365
    %v1367 = vpop.f32.mrb[0].mxu0
    %1368 = vmatprep.mubr.f32.mxu0 %v143
    %1369 = vmatmul.mubr.f32.gmra.mrb[0].mxu0 %v142
    %v1370 = vpop.f32.mrb[0].mxu0
    %v1371 = vadd.f32 0.0, %v1370
    %v1372 = vpop.f32.mrb[0].mxu0
    %1373 = vmatprep.mubr.f32.mxu0 %v147
    %1374 = vmatmul.mubr.f32.gmra.mrb[0].mxu0 %v146
    %v1375 = vpop.f32.mrb[0].mxu0
    %v1376 = vadd.f32 0.0, %v1375
    %v1377 = vpop.f32.mrb[0].mxu0
    %1378 = vmatprep.mubr.f32.mxu0 %v151
    %1379 = vmatmul.mubr.f32.gmra.mrb[0].mxu0 %v150
    %v1380 = vpop.f32.mrb[0].mxu0
    %v1381 = vadd.f32 0.0, %v1380
    %v1382 = vpop.f32.mrb[0].mxu0
    %1383 = vdwg.mxu0
    %1384 = vmatprep.subr.mxu0 0.0
    %1385 = vmatpush1.msra.mxu0 %v384
    %1386 = vmatprep.subr.mxu0 0.0
    %1387 = vmatpush1.msra.mxu0 %v391
    %1388 = vmatprep.subr.mxu0 0.0
    %1389 = vmatpush1.msra.mxu0 %v398
    %1390 = vmatprep.subr.mxu0 0.0
    %1391 = vmatpush1.msra.mxu0 %v405
    %1392 = vmatprep.subr.mxu0 0.0
    %1393 = vmatpush1.msra.mxu0 %v412
    %1394 = vmatprep.subr.mxu0 0.0
    %1395 = vmatpush1.msra.mxu0 %v419
    %1396 = vmatprep.subr.mxu0 0.0
    %1397 = vmatpush1.msra.mxu0 %v426
    %1398 = vmatprep.subr.mxu0 0.0
    %1399 = vmatpush1.msra.mxu0 %v433
    %1400 = vmatprep.subr.mxu0 0.0
    %1401 = vmatpush1.msra.mxu0 %v440
    %1402 = vmatprep.subr.mxu0 0.0
    %1403 = vmatpush1.msra.mxu0 %v447
    %1404 = vmatprep.subr.mxu0 0.0
    %1405 = vmatpush1.msra.mxu0 %v454
    %1406 = vmatprep.subr.mxu0 0.0
    %1407 = vmatpush1.msra.mxu0 %v461
    %1408 = vmatprep.subr.mxu0 0.0
    %1409 = vmatpush1.msra.mxu0 %v468
    %1410 = vmatprep.subr.mxu0 0.0
    %1411 = vmatpush1.msra.mxu0 %v475
    %1412 = vmatprep.subr.mxu0 0.0
    %1413 = vmatpush1.msra.mxu0 %v482
    %1414 = vmatprep.subr.mxu0 0.0
    %1415 = vmatpush1.msra.mxu0 %v489
    %1416 = vmatprep.subr.mxu0 0.0
    %1417 = vmatpush1.msra.mxu0 %v496
    %1418 = vmatprep.subr.mxu0 0.0
    %1419 = vmatpush1.msra.mxu0 %v503
    %1420 = vmatprep.subr.mxu0 0.0
    %1421 = vmatpush1.msra.mxu0 %v510
    %1422 = vmatprep.subr.mxu0 0.0
    %1423 = vmatpush1.msra.mxu0 %v517
    %1424 = vmatprep.subr.mxu0 0.0
    %1425 = vmatpush1.msra.mxu0 %v524
    %1426 = vmatprep.subr.mxu0 0.0
    %1427 = vmatpush1.msra.mxu0 %v531
    %1428 = vmatprep.subr.mxu0 0.0
    %1429 = vmatpush1.msra.mxu0 0.0
    %1430 = vmatprep.subr.mxu0 0.0
    %1431 = vmatpush1.msra.mxu0 0.0
    %1432 = vmatprep.subr.mxu0 0.0
    %1433 = vmatpush1.msra.mxu0 0.0
    %1434 = vmatprep.subr.mxu0 0.0
    %1435 = vmatpush1.msra.mxu0 0.0
    %1436 = vmatprep.subr.mxu0 0.0
    %1437 = vmatpush1.msra.mxu0 0.0
    %1438 = vmatprep.subr.mxu0 0.0
    %1439 = vmatpush1.msra.mxu0 0.0
    %1440 = vmatprep.subr.mxu0 0.0
    %1441 = vmatpush1.msra.mxu0 0.0
    %1442 = vmatprep.subr.mxu0 0.0
    %1443 = vmatpush1.msra.mxu0 0.0
    %1444 = vmatprep.subr.mxu0 0.0
    %1445 = vmatpush1.msra.mxu0 0.0
    %1446 = vmatprep.subr.mxu0 0.0
    %1447 = vmatpush1.msra.mxu0 0.0
    %1448 = vmatprep.mubr.f32.mxu0 %v534
    %1449 = vmatmul.mubr.f32.gmra.mrb[0].mxu0 %v120
    %v1450 = vpop.f32.mrb[0].mxu0
    %v1451 = vadd.f32 %v1341, %v1450
    %v1452 = vpop.f32.mrb[0].mxu0
    %1453 = vmatprep.mubr.f32.mxu0 %v537
    %1454 = vmatmul.mubr.f32.gmra.mrb[0].mxu0 %v124
    %v1455 = vpop.f32.mrb[0].mxu0
    %v1456 = vadd.f32 %v1346, %v1455
    %v1457 = vpop.f32.mrb[0].mxu0
    %1458 = vmatprep.mubr.f32.mxu0 %v540
    %1459 = vmatmul.mubr.f32.gmra.mrb[0].mxu0 %v128
    %v1460 = vpop.f32.mrb[0].mxu0
    %v1461 = vadd.f32 %v1351, %v1460
    %v1462 = vpop.f32.mrb[0].mxu0
    %1463 = vmatprep.mubr.f32.mxu0 %v543
    %1464 = vmatmul.mubr.f32.gmra.mrb[0].mxu0 %v132
    %v1465 = vpop.f32.mrb[0].mxu0
    %v1466 = vadd.f32 %v1356, %v1465
    %v1467 = vpop.f32.mrb[0].mxu0
    %1468 = vmatprep.mubr.f32.mxu0 %v546
    %1469 = vmatmul.mubr.f32.gmra.mrb[0].mxu0 %v136
    %v1470 = vpop.f32.mrb[0].mxu0
    %v1471 = vadd.f32 %v1361, %v1470
    %v1472 = vpop.f32.mrb[0].mxu0
    %1473 = vmatprep.mubr.f32.mxu0 %v549
    %1474 = vmatmul.mubr.f32.gmra.mrb[0].mxu0 %v140
    %v1475 = vpop.f32.mrb[0].mxu0
    %v1476 = vadd.f32 %v1366, %v1475
    %v1477 = vpop.f32.mrb[0].mxu0
    %1478 = vmatprep.mubr.f32.mxu0 %v552
    %1479 = vmatmul.mubr.f32.gmra.mrb[0].mxu0 %v144
    %v1480 = vpop.f32.mrb[0].mxu0
    %v1481 = vadd.f32 %v1371, %v1480
    %v1482 = vpop.f32.mrb[0].mxu0
    %1483 = vmatprep.mubr.f32.mxu0 %v555
    %1484 = vmatmul.mubr.f32.gmra.mrb[0].mxu0 %v148
    %v1485 = vpop.f32.mrb[0].mxu0
    %v1486 = vadd.f32 %v1376, %v1485
    %v1487 = vpop.f32.mrb[0].mxu0
    %1488 = vmatprep.mubr.f32.mxu0 %v558
    %1489 = vmatmul.mubr.f32.gmra.mrb[0].mxu0 %v152
    %v1490 = vpop.f32.mrb[0].mxu0
    %v1491 = vadd.f32 %v1381, %v1490
    %v1492 = vpop.f32.mrb[0].mxu0
    %1493 = vdwg.mxu0
    %1494 = vst [vmem:[#allocation8] sm:$0xff] %v746
    %1495 = vst [vmem:[#allocation8 + $0x8] sm:$0xff] %v748
    %1496 = vst [vmem:[#allocation8 + $0x10] sm:$0xff] %v984
    %1497 = vst [vmem:[#allocation8 + $0x18] sm:$0xff] %v986
    %1498 = vst [vmem:[#allocation8 + $0x20] sm:$0xff] %v1222
    %1499 = vst [vmem:[#allocation8 + $0x28] sm:$0xff] %v1224
    %vm1500 = vcmask 130048
    %1501 = vst.msk [vmem:[#allocation8 + $0x30] sm:$0xff] %vm1500, %v1451
    %1502 = vst [vmem:[#allocation8 + $0x38] sm:$0xff] %v752
    %1503 = vst [vmem:[#allocation8 + $0x40] sm:$0xff] %v754
    %1504 = vst [vmem:[#allocation8 + $0x48] sm:$0xff] %v990
    %1505 = vst [vmem:[#allocation8 + $0x50] sm:$0xff] %v992
    %1506 = vst [vmem:[#allocation8 + $0x58] sm:$0xff] %v1228
    %1507 = vst [vmem:[#allocation8 + $0x60] sm:$0xff] %v1230
    %1508 = vst.msk [vmem:[#allocation8 + $0x68] sm:$0xff] %vm1500, %v1456
    %1509 = vst [vmem:[#allocation8 + $0x70] sm:$0xff] %v758
    %1510 = vst [vmem:[#allocation8 + $0x78] sm:$0xff] %v760
    %1511 = vst [vmem:[#allocation8 + $0x80] sm:$0xff] %v996
    %1512 = vst [vmem:[#allocation8 + $0x88] sm:$0xff] %v998
    %1513 = vst [vmem:[#allocation8 + $0x90] sm:$0xff] %v1234
    %1514 = vst [vmem:[#allocation8 + $0x98] sm:$0xff] %v1236
    %1515 = vst.msk [vmem:[#allocation8 + $0xa0] sm:$0xff] %vm1500, %v1461
    %1516 = vst [vmem:[#allocation8 + $0xa8] sm:$0xff] %v764
    %1517 = vst [vmem:[#allocation8 + $0xb0] sm:$0xff] %v766
    %1518 = vst [vmem:[#allocation8 + $0xb8] sm:$0xff] %v1002
    %1519 = vst [vmem:[#allocation8 + $0xc0] sm:$0xff] %v1004
    %1520 = vst [vmem:[#allocation8 + $0xc8] sm:$0xff] %v1240
    %1521 = vst [vmem:[#allocation8 + $0xd0] sm:$0xff] %v1242
    %1522 = vst.msk [vmem:[#allocation8 + $0xd8] sm:$0xff] %vm1500, %v1466
    %1523 = vst [vmem:[#allocation8 + $0xe0] sm:$0xff] %v770
    %1524 = vst [vmem:[#allocation8 + $0xe8] sm:$0xff] %v772
    %1525 = vst [vmem:[#allocation8 + $0xf0] sm:$0xff] %v1008
    %1526 = vst [vmem:[#allocation8 + $0xf8] sm:$0xff] %v1010
    %1527 = vst [vmem:[#allocation8 + $0x100] sm:$0xff] %v1246
    %1528 = vst [vmem:[#allocation8 + $0x108] sm:$0xff] %v1248
    %1529 = vst.msk [vmem:[#allocation8 + $0x110] sm:$0xff] %vm1500, %v1471
    %1530 = vst [vmem:[#allocation8 + $0x118] sm:$0xff] %v776
    %1531 = vst [vmem:[#allocation8 + $0x120] sm:$0xff] %v778
    %1532 = vst [vmem:[#allocation8 + $0x128] sm:$0xff] %v1014
    %1533 = vst [vmem:[#allocation8 + $0x130] sm:$0xff] %v1016
    %1534 = vst [vmem:[#allocation8 + $0x138] sm:$0xff] %v1252
    %1535 = vst [vmem:[#allocation8 + $0x140] sm:$0xff] %v1254
    %1536 = vst.msk [vmem:[#allocation8 + $0x148] sm:$0xff] %vm1500, %v1476
    %1537 = vst [vmem:[#allocation8 + $0x150] sm:$0xff] %v782
    %1538 = vst [vmem:[#allocation8 + $0x158] sm:$0xff] %v784
    %1539 = vst [vmem:[#allocation8 + $0x160] sm:$0xff] %v1020
    %1540 = vst [vmem:[#allocation8 + $0x168] sm:$0xff] %v1022
    %1541 = vst [vmem:[#allocation8 + $0x170] sm:$0xff] %v1258
    %1542 = vst [vmem:[#allocation8 + $0x178] sm:$0xff] %v1260
    %1543 = vst.msk [vmem:[#allocation8 + $0x180] sm:$0xff] %vm1500, %v1481
    %1544 = vst [vmem:[#allocation8 + $0x188] sm:$0xff] %v788
    %1545 = vst [vmem:[#allocation8 + $0x190] sm:$0xff] %v790
    %1546 = vst [vmem:[#allocation8 + $0x198] sm:$0xff] %v1026
    %1547 = vst [vmem:[#allocation8 + $0x1a0] sm:$0xff] %v1028
    %1548 = vst [vmem:[#allocation8 + $0x1a8] sm:$0xff] %v1264
    %1549 = vst [vmem:[#allocation8 + $0x1b0] sm:$0xff] %v1266
    %1550 = vst.msk [vmem:[#allocation8 + $0x1b8] sm:$0xff] %vm1500, %v1486
    %1551 = vst [vmem:[#allocation8 + $0x1c0] sm:$0xff] %v794
    %1552 = vst [vmem:[#allocation8 + $0x1c8] sm:$0xff] %v796
    %1553 = vst [vmem:[#allocation8 + $0x1d0] sm:$0xff] %v1032
    %1554 = vst [vmem:[#allocation8 + $0x1d8] sm:$0xff] %v1034
    %1555 = vst [vmem:[#allocation8 + $0x1e0] sm:$0xff] %v1270
    %1556 = vst [vmem:[#allocation8 + $0x1e8] sm:$0xff] %v1272
    %1557 = vst.msk [vmem:[#allocation8 + $0x1f0] sm:$0xff] %vm1500, %v1491
    // Predicated region
    $region26: #{tpu_custom_call.1} parent=1 // pred_check
      _
    $region27: #{tpu_custom_call.1} parent=1 // pred_check_branch
      %1559 = sbr.rel (0) target = $region29
    $region28: #{tpu_custom_call.1} parent=1 // pred_region
      %s1561 = ssub.s32 8064, 8064
      %1562 = vsyncadd [#allocation4], %s1561
      %s1563 = sshll.u32 [#allocation8], 4
      %s1564 = int_to_ptr.vmem [resolvable:$true] %s1563
      %1569 = dma.vmem_to_hbm [thread:$0]  %s1564, 8064, %s3, [#allocation4], 896, 896, 56
    $region29: #{tpu_custom_call.1} parent=1 // pred_fallthru
      _
    // Predicated region
    $region30: #{tpu_custom_call.1} parent=1 // pred_check
      _
    $region31: #{tpu_custom_call.1} parent=1 // pred_check_branch
      %1571 = sbr.rel (0) target = $region33
    $region32: #{tpu_custom_call.1} parent=1 // pred_region
      %1572 = dma.done [#allocation4], 8064
    $region33: #{tpu_custom_call.1} parent=1 // pred_fallthru
      _
    %1573 = vsyncpa [#allocation3], 1
    %1574 = vsyncpa [#allocation6], 1
    %1575 = vsyncpa [#allocation4], 1

</llo_original>
